<compile_context>
chip_gen: v7x
topology: tpu7x:2x2x1
jax: 0.10.0
libtpu: 0.0.40
codegen_flags: <defaults>
</compile_context>

<pallas_src>
import jax
import jax.numpy as jnp
from jax import lax
from jax.experimental import pallas as pl
from jax.experimental.pallas import tpu as pltpu


def ensemble_kernel(emb_ref,      # (S, B, Dp)  zero-padded embeddings (BOW head)
                    xproj_ref,    # (S, B, 8H)  precomputed gate inputs, bias folded,
                                  #             columns [i_f|i_b|f_f|f_b|g_f|g_b|o_f|o_b],
                                  #             backward half already time-reversed
                    whh_ref,      # (2H, 8H)    block-diagonal recurrent weight, same col layout
                    wl_ref,       # (2H, O)     lstm head weight (transposed)
                    bl_ref,       # (1, O)
                    wb_ref,       # (Dp, O)     bow head weight (transposed, zero-padded rows)
                    bbow_ref,     # (1, O)
                    out_ref):     # (B, O)
    S, B, _ = xproj_ref.shape
    H2 = whh_ref.shape[0]         # 2H  (carry width, also the per-gate slice width)

    whh = whh_ref[...]            # 64x256 f32 = 16 vregs, held live across the short loop

    def step(t, carry):
        h, c = carry                                            # (B, 2H) each, [fwd|bwd]
        gates = xproj_ref[t] + jnp.dot(
            h, whh, preferred_element_type=jnp.float32)         # (B, 8H)
        sg = jax.nn.sigmoid(gates)                              # full-vreg EUP
        th = jnp.tanh(gates)                                    # full-vreg EUP
        i_g = sg[:, 0 * H2:1 * H2]                              # [i_f | i_b]
        f_g = sg[:, 1 * H2:2 * H2]                              # [f_f | f_b]
        g_g = th[:, 2 * H2:3 * H2]                              # [g_f | g_b]
        o_g = sg[:, 3 * H2:4 * H2]                              # [o_f | o_b]
        c_new = f_g * c + i_g * g_g                             # lanes already aligned
        h_new = o_g * jnp.tanh(c_new)
        return (h_new, c_new)

    h0 = jnp.zeros((B, H2), jnp.float32)
    c0 = jnp.zeros((B, H2), jnp.float32)
    h_fin, _ = lax.fori_loop(0, S, step, (h0, c0), unroll=True)

    # lstm head: cat([h_fwd, h_bwd], dim=1) @ W.T + b  (h_fin is already [h_f|h_b])
    lstm_logits = (jnp.dot(h_fin, wl_ref[...], preferred_element_type=jnp.float32)
                   + bl_ref[...])                               # (B, O)

    # bag-of-words head: mean over time, then linear (padded D cols are zero on both sides)
    sent_vec = jnp.mean(emb_ref[...], axis=0)                   # (B, Dp)
    bow_logits = (jnp.dot(sent_vec, wb_ref[...], preferred_element_type=jnp.float32)
                  + bbow_ref[...])                              # (B, O)

    # torch: F.log_softmax(x.view(1, -1), dim=1) == softmax over ALL B*O elems
    def log_softmax_flat(v):
        m = jnp.max(v)
        lse = m + jnp.log(jnp.sum(jnp.exp(v - m)))
        return v - lse

    out_ref[...] = 0.5 * (log_softmax_flat(bow_logits) + log_softmax_flat(lstm_logits))


def _interleave_gate_cols(a, b, H):
    # a, b: (..., 4H) with per-direction gate order [i|f|g|o]
    # -> (..., 8H) ordered [i_a|i_b|f_a|f_b|g_a|g_b|o_a|o_b]
    parts = []
    for k in range(4):
        parts.append(a[..., k * H:(k + 1) * H])
        parts.append(b[..., k * H:(k + 1) * H])
    return jnp.concatenate(parts, axis=-1)


def init_params(key, vocab_size, input_size, hidden_size, output_size, padding_token):
    ks = jax.random.split(key, 13)
    s = 0.1
    H4 = 4 * hidden_size
    emb = jax.random.normal(ks[0], (vocab_size, input_size), jnp.float32)
    emb = emb.at[padding_token].set(0.0)
    return dict(
        embeddings=emb,
        w_ih_f=s * jax.random.normal(ks[1], (H4, input_size), jnp.float32),
        w_hh_f=s * jax.random.normal(ks[2], (H4, hidden_size), jnp.float32),
        b_ih_f=s * jax.random.normal(ks[3], (H4,), jnp.float32),
        b_hh_f=s * jax.random.normal(ks[4], (H4,), jnp.float32),
        w_ih_b=s * jax.random.normal(ks[5], (H4, input_size), jnp.float32),
        w_hh_b=s * jax.random.normal(ks[6], (H4, hidden_size), jnp.float32),
        b_ih_b=s * jax.random.normal(ks[7], (H4,), jnp.float32),
        b_hh_b=s * jax.random.normal(ks[8], (H4,), jnp.float32),
        w_lstm_head=s * jax.random.normal(ks[9], (output_size, 2 * hidden_size), jnp.float32),
        b_lstm_head=s * jax.random.normal(ks[10], (output_size,), jnp.float32),
        w_bow=s * jax.random.normal(ks[11], (output_size, 300), jnp.float32),
        b_bow=s * jax.random.normal(ks[12], (output_size,), jnp.float32),
    )


def ensemble_forward(x_ids, p, hidden_size, output_size):
    H, O = hidden_size, output_size
    embedded = jnp.take(p["embeddings"], x_ids, axis=0)         # (B, S, D)
    B, S, D = embedded.shape
    emb_sbd = jnp.transpose(embedded, (1, 0, 2))                # (S, B, D)

    # ---- input projections hoisted out of the recurrence (one big matmul per dir) ----
    b_f = p["b_ih_f"] + p["b_hh_f"]                             # bias folded in here
    b_b = p["b_ih_b"] + p["b_hh_b"]
    xf = jnp.einsum("sbd,dg->sbg", emb_sbd, p["w_ih_f"].T) + b_f         # (S, B, 4H)
    xb = jnp.einsum("sbd,dg->sbg", emb_sbd[::-1], p["w_ih_b"].T) + b_b   # reversed time
    xproj = _interleave_gate_cols(xf, xb, H)                    # (S, B, 8H)

    # ---- fused block-diagonal recurrent weight, same gate-interleaved columns ----
    zeros_h = jnp.zeros((H, 4 * H), jnp.float32)
    whh_cat = _interleave_gate_cols(
        jnp.concatenate([p["w_hh_f"].T, zeros_h], axis=0),      # rows 0:H   <- h_fwd
        jnp.concatenate([zeros_h, p["w_hh_b"].T], axis=0),      # rows H:2H  <- h_bwd
        H)                                                      # (2H, 8H)

    wl = p["w_lstm_head"].T                                     # (2H, O)
    bl = p["b_lstm_head"].reshape(1, O)

    # ---- BOW head: pad D 300 -> 384 for lane-dense loads; zero rows keep result exact ----
    Dp = 128 * ((D + 127) // 128)
    emb_pad = jnp.pad(emb_sbd, ((0, 0), (0, 0), (0, Dp - D)))   # (S, B, Dp)
    wb = jnp.pad(p["w_bow"].T, ((0, Dp - D), (0, 0)))           # (Dp, O)
    bbow = p["b_bow"].reshape(1, O)

    # Whole-array VMEM residency: total footprint << VMEM on v5e/v6e/v7x, and the
    # kernel is latency-bound, so no grid / BlockSpec tiling (per-step overhead
    # would dominate).  At B=2 the single-TC launch is also fine on v7x.
    vmem = pl.BlockSpec(memory_space=pltpu.MemorySpace.VMEM)
    out = pl.pallas_call(
        ensemble_kernel,
        out_shape=jax.ShapeDtypeStruct((B, O), jnp.float32),
        in_specs=[vmem] * 7,
        out_specs=vmem,
    )(emb_pad, xproj, whh_cat, wl, bl, wb, bbow)
    # torch returns mean of the two (1, B*O) log-softmax vectors
    return out.reshape(1, B * O)


def reference_forward(x_ids, p, hidden_size, output_size):
    # pure-JAX reference mirroring the PyTorch module
    embedded = jnp.take(p["embeddings"], x_ids, axis=0)
    B, S, D = embedded.shape
    H = hidden_size

    def lstm_dir(seq, w_ih, w_hh, b_ih, b_hh):
        def step(carry, x_t):
            h, c = carry
            gates = x_t @ w_ih.T + h @ w_hh.T + b_ih + b_hh
            i = jax.nn.sigmoid(gates[:, :H])
            f = jax.nn.sigmoid(gates[:, H:2 * H])
            g = jnp.tanh(gates[:, 2 * H:3 * H])
            o = jax.nn.sigmoid(gates[:, 3 * H:4 * H])
            c = f * c + i * g
            h = o * jnp.tanh(c)
            return (h, c), None
        (h, _), _ = lax.scan(step, (jnp.zeros((B, H)), jnp.zeros((B, H))), seq)
        return h

    seq = jnp.transpose(embedded, (1, 0, 2))
    h_f = lstm_dir(seq, p["w_ih_f"], p["w_hh_f"], p["b_ih_f"], p["b_hh_f"])
    h_b = lstm_dir(seq[::-1], p["w_ih_b"], p["w_hh_b"], p["b_ih_b"], p["b_hh_b"])
    hidden = jnp.concatenate([h_f, h_b], axis=1)
    lstm_1 = hidden @ p["w_lstm_head"].T + p["b_lstm_head"]
    lstm_scores = jax.nn.log_softmax(lstm_1.reshape(1, -1), axis=1)
    sent_vec = jnp.mean(embedded, axis=1)
    bow_1 = sent_vec @ p["w_bow"].T + p["b_bow"]
    bow_scores = jax.nn.log_softmax(bow_1.reshape(1, -1), axis=1)
    return 0.5 * (bow_scores + lstm_scores)


if __name__ == "__main__":
    B, S, D, H, O = 2, 8, 300, 32, 4     # input_size=300 (bow head requires it)
    VOCAB, PAD = 20, 0
    key = jax.random.PRNGKey(0)
    k_params, k_x = jax.random.split(key)
    params = init_params(k_params, VOCAB, D, H, O, PAD)
    x = jax.random.randint(k_x, (B, S), 0, VOCAB, dtype=jnp.int32)

    out = ensemble_forward(x, params, H, O)
    out = jax.block_until_ready(out)

    ref = reference_forward(x, params, H, O)
    assert out.shape == (1, B * O)
    assert jnp.allclose(out, ref, atol=1e-4, rtol=1e-4), (out, ref)
    print("KERNEL_OK")
</pallas_src>

<mosaic_0001>
module attributes {stable_mosaic.version = 11 : i64} {
  func.func @ensemble_kernel(%arg0: memref<8x2x384xf32, #tpu.memory_space<vmem>>, %arg1: memref<8x2x256xf32, #tpu.memory_space<vmem>>, %arg2: memref<64x256xf32, #tpu.memory_space<vmem>>, %arg3: memref<64x4xf32, #tpu.memory_space<vmem>>, %arg4: memref<1x4xf32, #tpu.memory_space<vmem>>, %arg5: memref<384x4xf32, #tpu.memory_space<vmem>>, %arg6: memref<1x4xf32, #tpu.memory_space<vmem>>, %arg7: memref<2x4xf32, #tpu.memory_space<vmem>>) attributes {dimension_semantics = [], scalar_prefetch = 0 : i64, scratch_operands = 0 : i64, tpu.core_type = #tpu.core_type<tc>} {
    %c0 = arith.constant 0 : index
    %c0_0 = arith.constant 0 : index
    %0 = vector.load %arg2[%c0, %c0_0] : memref<64x256xf32, #tpu.memory_space<vmem>>, vector<64x256xf32>
    %cst = arith.constant 0.000000e+00 : f32
    %1 = vector.broadcast %cst : f32 to vector<2x64xf32>
    %cst_1 = arith.constant 0.000000e+00 : f32
    %2 = vector.broadcast %cst_1 : f32 to vector<2x64xf32>
    %c0_i32 = arith.constant 0 : i32
    %3 = arith.index_cast %c0_i32 : i32 to index
    %c0_2 = arith.constant 0 : index
    %c0_3 = arith.constant 0 : index
    %4 = vector.load %arg1[%3, %c0_2, %c0_3] : memref<8x2x256xf32, #tpu.memory_space<vmem>>, vector<1x2x256xf32>
    %5 = vector.shape_cast %4 : vector<1x2x256xf32> to vector<2x256xf32>
    %cst_4 = arith.constant dense<0.000000e+00> : vector<2x256xf32>
    %6 = tpu.matmul %1, %0, %cst_4 {dimension_numbers = #tpu.dot_dimension_numbers<[1], [0], [0], [1], [0, 0, 1, 1], [], []>} : vector<2x64xf32>, vector<64x256xf32>, vector<2x256xf32> -> vector<2x256xf32>
    %7 = arith.addf %5, %6 : vector<2x256xf32>
    %8 = arith.negf %7 : vector<2x256xf32>
    %9 = math.exp %8 : vector<2x256xf32>
    %cst_5 = arith.constant 1.000000e+00 : f32
    %10 = vector.broadcast %cst_5 : f32 to vector<2x256xf32>
    %11 = arith.addf %10, %9 : vector<2x256xf32>
    %12 = arith.divf %10, %11 : vector<2x256xf32>
    %13 = math.tanh %7 : vector<2x256xf32>
    %14 = vector.extract_strided_slice %12 {offsets = [0, 0], sizes = [2, 64], strides = [1, 1]} : vector<2x256xf32> to vector<2x64xf32>
    %15 = vector.extract_strided_slice %12 {offsets = [0, 64], sizes = [2, 64], strides = [1, 1]} : vector<2x256xf32> to vector<2x64xf32>
    %16 = vector.extract_strided_slice %13 {offsets = [0, 128], sizes = [2, 64], strides = [1, 1]} : vector<2x256xf32> to vector<2x64xf32>
    %17 = vector.extract_strided_slice %12 {offsets = [0, 192], sizes = [2, 64], strides = [1, 1]} : vector<2x256xf32> to vector<2x64xf32>
    %18 = arith.mulf %15, %2 : vector<2x64xf32>
    %19 = arith.mulf %14, %16 : vector<2x64xf32>
    %20 = arith.addf %18, %19 : vector<2x64xf32>
    %21 = math.tanh %20 : vector<2x64xf32>
    %22 = arith.mulf %17, %21 : vector<2x64xf32>
    %c1_i32 = arith.constant 1 : i32
    %23 = arith.index_cast %c1_i32 : i32 to index
    %c0_6 = arith.constant 0 : index
    %c0_7 = arith.constant 0 : index
    %24 = vector.load %arg1[%23, %c0_6, %c0_7] : memref<8x2x256xf32, #tpu.memory_space<vmem>>, vector<1x2x256xf32>
    %25 = vector.shape_cast %24 : vector<1x2x256xf32> to vector<2x256xf32>
    %cst_8 = arith.constant dense<0.000000e+00> : vector<2x256xf32>
    %26 = tpu.matmul %22, %0, %cst_8 {dimension_numbers = #tpu.dot_dimension_numbers<[1], [0], [0], [1], [0, 0, 1, 1], [], []>} : vector<2x64xf32>, vector<64x256xf32>, vector<2x256xf32> -> vector<2x256xf32>
    %27 = arith.addf %25, %26 : vector<2x256xf32>
    %28 = arith.negf %27 : vector<2x256xf32>
    %29 = math.exp %28 : vector<2x256xf32>
    %cst_9 = arith.constant 1.000000e+00 : f32
    %30 = vector.broadcast %cst_9 : f32 to vector<2x256xf32>
    %31 = arith.addf %30, %29 : vector<2x256xf32>
    %32 = arith.divf %30, %31 : vector<2x256xf32>
    %33 = math.tanh %27 : vector<2x256xf32>
    %34 = vector.extract_strided_slice %32 {offsets = [0, 0], sizes = [2, 64], strides = [1, 1]} : vector<2x256xf32> to vector<2x64xf32>
    %35 = vector.extract_strided_slice %32 {offsets = [0, 64], sizes = [2, 64], strides = [1, 1]} : vector<2x256xf32> to vector<2x64xf32>
    %36 = vector.extract_strided_slice %33 {offsets = [0, 128], sizes = [2, 64], strides = [1, 1]} : vector<2x256xf32> to vector<2x64xf32>
    %37 = vector.extract_strided_slice %32 {offsets = [0, 192], sizes = [2, 64], strides = [1, 1]} : vector<2x256xf32> to vector<2x64xf32>
    %38 = arith.mulf %35, %20 : vector<2x64xf32>
    %39 = arith.mulf %34, %36 : vector<2x64xf32>
    %40 = arith.addf %38, %39 : vector<2x64xf32>
    %41 = math.tanh %40 : vector<2x64xf32>
    %42 = arith.mulf %37, %41 : vector<2x64xf32>
    %c2_i32 = arith.constant 2 : i32
    %43 = arith.index_cast %c2_i32 : i32 to index
    %c0_10 = arith.constant 0 : index
    %c0_11 = arith.constant 0 : index
    %44 = vector.load %arg1[%43, %c0_10, %c0_11] : memref<8x2x256xf32, #tpu.memory_space<vmem>>, vector<1x2x256xf32>
    %45 = vector.shape_cast %44 : vector<1x2x256xf32> to vector<2x256xf32>
    %cst_12 = arith.constant dense<0.000000e+00> : vector<2x256xf32>
    %46 = tpu.matmul %42, %0, %cst_12 {dimension_numbers = #tpu.dot_dimension_numbers<[1], [0], [0], [1], [0, 0, 1, 1], [], []>} : vector<2x64xf32>, vector<64x256xf32>, vector<2x256xf32> -> vector<2x256xf32>
    %47 = arith.addf %45, %46 : vector<2x256xf32>
    %48 = arith.negf %47 : vector<2x256xf32>
    %49 = math.exp %48 : vector<2x256xf32>
    %cst_13 = arith.constant 1.000000e+00 : f32
    %50 = vector.broadcast %cst_13 : f32 to vector<2x256xf32>
    %51 = arith.addf %50, %49 : vector<2x256xf32>
    %52 = arith.divf %50, %51 : vector<2x256xf32>
    %53 = math.tanh %47 : vector<2x256xf32>
    %54 = vector.extract_strided_slice %52 {offsets = [0, 0], sizes = [2, 64], strides = [1, 1]} : vector<2x256xf32> to vector<2x64xf32>
    %55 = vector.extract_strided_slice %52 {offsets = [0, 64], sizes = [2, 64], strides = [1, 1]} : vector<2x256xf32> to vector<2x64xf32>
    %56 = vector.extract_strided_slice %53 {offsets = [0, 128], sizes = [2, 64], strides = [1, 1]} : vector<2x256xf32> to vector<2x64xf32>
    %57 = vector.extract_strided_slice %52 {offsets = [0, 192], sizes = [2, 64], strides = [1, 1]} : vector<2x256xf32> to vector<2x64xf32>
    %58 = arith.mulf %55, %40 : vector<2x64xf32>
    %59 = arith.mulf %54, %56 : vector<2x64xf32>
    %60 = arith.addf %58, %59 : vector<2x64xf32>
    %61 = math.tanh %60 : vector<2x64xf32>
    %62 = arith.mulf %57, %61 : vector<2x64xf32>
    %c3_i32 = arith.constant 3 : i32
    %63 = arith.index_cast %c3_i32 : i32 to index
    %c0_14 = arith.constant 0 : index
    %c0_15 = arith.constant 0 : index
    %64 = vector.load %arg1[%63, %c0_14, %c0_15] : memref<8x2x256xf32, #tpu.memory_space<vmem>>, vector<1x2x256xf32>
    %65 = vector.shape_cast %64 : vector<1x2x256xf32> to vector<2x256xf32>
    %cst_16 = arith.constant dense<0.000000e+00> : vector<2x256xf32>
    %66 = tpu.matmul %62, %0, %cst_16 {dimension_numbers = #tpu.dot_dimension_numbers<[1], [0], [0], [1], [0, 0, 1, 1], [], []>} : vector<2x64xf32>, vector<64x256xf32>, vector<2x256xf32> -> vector<2x256xf32>
    %67 = arith.addf %65, %66 : vector<2x256xf32>
    %68 = arith.negf %67 : vector<2x256xf32>
    %69 = math.exp %68 : vector<2x256xf32>
    %cst_17 = arith.constant 1.000000e+00 : f32
    %70 = vector.broadcast %cst_17 : f32 to vector<2x256xf32>
    %71 = arith.addf %70, %69 : vector<2x256xf32>
    %72 = arith.divf %70, %71 : vector<2x256xf32>
    %73 = math.tanh %67 : vector<2x256xf32>
    %74 = vector.extract_strided_slice %72 {offsets = [0, 0], sizes = [2, 64], strides = [1, 1]} : vector<2x256xf32> to vector<2x64xf32>
    %75 = vector.extract_strided_slice %72 {offsets = [0, 64], sizes = [2, 64], strides = [1, 1]} : vector<2x256xf32> to vector<2x64xf32>
    %76 = vector.extract_strided_slice %73 {offsets = [0, 128], sizes = [2, 64], strides = [1, 1]} : vector<2x256xf32> to vector<2x64xf32>
    %77 = vector.extract_strided_slice %72 {offsets = [0, 192], sizes = [2, 64], strides = [1, 1]} : vector<2x256xf32> to vector<2x64xf32>
    %78 = arith.mulf %75, %60 : vector<2x64xf32>
    %79 = arith.mulf %74, %76 : vector<2x64xf32>
    %80 = arith.addf %78, %79 : vector<2x64xf32>
    %81 = math.tanh %80 : vector<2x64xf32>
    %82 = arith.mulf %77, %81 : vector<2x64xf32>
    %c4_i32 = arith.constant 4 : i32
    %83 = arith.index_cast %c4_i32 : i32 to index
    %c0_18 = arith.constant 0 : index
    %c0_19 = arith.constant 0 : index
    %84 = vector.load %arg1[%83, %c0_18, %c0_19] : memref<8x2x256xf32, #tpu.memory_space<vmem>>, vector<1x2x256xf32>
    %85 = vector.shape_cast %84 : vector<1x2x256xf32> to vector<2x256xf32>
    %cst_20 = arith.constant dense<0.000000e+00> : vector<2x256xf32>
    %86 = tpu.matmul %82, %0, %cst_20 {dimension_numbers = #tpu.dot_dimension_numbers<[1], [0], [0], [1], [0, 0, 1, 1], [], []>} : vector<2x64xf32>, vector<64x256xf32>, vector<2x256xf32> -> vector<2x256xf32>
    %87 = arith.addf %85, %86 : vector<2x256xf32>
    %88 = arith.negf %87 : vector<2x256xf32>
    %89 = math.exp %88 : vector<2x256xf32>
    %cst_21 = arith.constant 1.000000e+00 : f32
    %90 = vector.broadcast %cst_21 : f32 to vector<2x256xf32>
    %91 = arith.addf %90, %89 : vector<2x256xf32>
    %92 = arith.divf %90, %91 : vector<2x256xf32>
    %93 = math.tanh %87 : vector<2x256xf32>
    %94 = vector.extract_strided_slice %92 {offsets = [0, 0], sizes = [2, 64], strides = [1, 1]} : vector<2x256xf32> to vector<2x64xf32>
    %95 = vector.extract_strided_slice %92 {offsets = [0, 64], sizes = [2, 64], strides = [1, 1]} : vector<2x256xf32> to vector<2x64xf32>
    %96 = vector.extract_strided_slice %93 {offsets = [0, 128], sizes = [2, 64], strides = [1, 1]} : vector<2x256xf32> to vector<2x64xf32>
    %97 = vector.extract_strided_slice %92 {offsets = [0, 192], sizes = [2, 64], strides = [1, 1]} : vector<2x256xf32> to vector<2x64xf32>
    %98 = arith.mulf %95, %80 : vector<2x64xf32>
    %99 = arith.mulf %94, %96 : vector<2x64xf32>
    %100 = arith.addf %98, %99 : vector<2x64xf32>
    %101 = math.tanh %100 : vector<2x64xf32>
    %102 = arith.mulf %97, %101 : vector<2x64xf32>
    %c5_i32 = arith.constant 5 : i32
    %103 = arith.index_cast %c5_i32 : i32 to index
    %c0_22 = arith.constant 0 : index
    %c0_23 = arith.constant 0 : index
    %104 = vector.load %arg1[%103, %c0_22, %c0_23] : memref<8x2x256xf32, #tpu.memory_space<vmem>>, vector<1x2x256xf32>
    %105 = vector.shape_cast %104 : vector<1x2x256xf32> to vector<2x256xf32>
    %cst_24 = arith.constant dense<0.000000e+00> : vector<2x256xf32>
    %106 = tpu.matmul %102, %0, %cst_24 {dimension_numbers = #tpu.dot_dimension_numbers<[1], [0], [0], [1], [0, 0, 1, 1], [], []>} : vector<2x64xf32>, vector<64x256xf32>, vector<2x256xf32> -> vector<2x256xf32>
    %107 = arith.addf %105, %106 : vector<2x256xf32>
    %108 = arith.negf %107 : vector<2x256xf32>
    %109 = math.exp %108 : vector<2x256xf32>
    %cst_25 = arith.constant 1.000000e+00 : f32
    %110 = vector.broadcast %cst_25 : f32 to vector<2x256xf32>
    %111 = arith.addf %110, %109 : vector<2x256xf32>
    %112 = arith.divf %110, %111 : vector<2x256xf32>
    %113 = math.tanh %107 : vector<2x256xf32>
    %114 = vector.extract_strided_slice %112 {offsets = [0, 0], sizes = [2, 64], strides = [1, 1]} : vector<2x256xf32> to vector<2x64xf32>
    %115 = vector.extract_strided_slice %112 {offsets = [0, 64], sizes = [2, 64], strides = [1, 1]} : vector<2x256xf32> to vector<2x64xf32>
    %116 = vector.extract_strided_slice %113 {offsets = [0, 128], sizes = [2, 64], strides = [1, 1]} : vector<2x256xf32> to vector<2x64xf32>
    %117 = vector.extract_strided_slice %112 {offsets = [0, 192], sizes = [2, 64], strides = [1, 1]} : vector<2x256xf32> to vector<2x64xf32>
    %118 = arith.mulf %115, %100 : vector<2x64xf32>
    %119 = arith.mulf %114, %116 : vector<2x64xf32>
    %120 = arith.addf %118, %119 : vector<2x64xf32>
    %121 = math.tanh %120 : vector<2x64xf32>
    %122 = arith.mulf %117, %121 : vector<2x64xf32>
    %c6_i32 = arith.constant 6 : i32
    %123 = arith.index_cast %c6_i32 : i32 to index
    %c0_26 = arith.constant 0 : index
    %c0_27 = arith.constant 0 : index
    %124 = vector.load %arg1[%123, %c0_26, %c0_27] : memref<8x2x256xf32, #tpu.memory_space<vmem>>, vector<1x2x256xf32>
    %125 = vector.shape_cast %124 : vector<1x2x256xf32> to vector<2x256xf32>
    %cst_28 = arith.constant dense<0.000000e+00> : vector<2x256xf32>
    %126 = tpu.matmul %122, %0, %cst_28 {dimension_numbers = #tpu.dot_dimension_numbers<[1], [0], [0], [1], [0, 0, 1, 1], [], []>} : vector<2x64xf32>, vector<64x256xf32>, vector<2x256xf32> -> vector<2x256xf32>
    %127 = arith.addf %125, %126 : vector<2x256xf32>
    %128 = arith.negf %127 : vector<2x256xf32>
    %129 = math.exp %128 : vector<2x256xf32>
    %cst_29 = arith.constant 1.000000e+00 : f32
    %130 = vector.broadcast %cst_29 : f32 to vector<2x256xf32>
    %131 = arith.addf %130, %129 : vector<2x256xf32>
    %132 = arith.divf %130, %131 : vector<2x256xf32>
    %133 = math.tanh %127 : vector<2x256xf32>
    %134 = vector.extract_strided_slice %132 {offsets = [0, 0], sizes = [2, 64], strides = [1, 1]} : vector<2x256xf32> to vector<2x64xf32>
    %135 = vector.extract_strided_slice %132 {offsets = [0, 64], sizes = [2, 64], strides = [1, 1]} : vector<2x256xf32> to vector<2x64xf32>
    %136 = vector.extract_strided_slice %133 {offsets = [0, 128], sizes = [2, 64], strides = [1, 1]} : vector<2x256xf32> to vector<2x64xf32>
    %137 = vector.extract_strided_slice %132 {offsets = [0, 192], sizes = [2, 64], strides = [1, 1]} : vector<2x256xf32> to vector<2x64xf32>
    %138 = arith.mulf %135, %120 : vector<2x64xf32>
    %139 = arith.mulf %134, %136 : vector<2x64xf32>
    %140 = arith.addf %138, %139 : vector<2x64xf32>
    %141 = math.tanh %140 : vector<2x64xf32>
    %142 = arith.mulf %137, %141 : vector<2x64xf32>
    %c7_i32 = arith.constant 7 : i32
    %143 = arith.index_cast %c7_i32 : i32 to index
    %c0_30 = arith.constant 0 : index
    %c0_31 = arith.constant 0 : index
    %144 = vector.load %arg1[%143, %c0_30, %c0_31] : memref<8x2x256xf32, #tpu.memory_space<vmem>>, vector<1x2x256xf32>
    %145 = vector.shape_cast %144 : vector<1x2x256xf32> to vector<2x256xf32>
    %cst_32 = arith.constant dense<0.000000e+00> : vector<2x256xf32>
    %146 = tpu.matmul %142, %0, %cst_32 {dimension_numbers = #tpu.dot_dimension_numbers<[1], [0], [0], [1], [0, 0, 1, 1], [], []>} : vector<2x64xf32>, vector<64x256xf32>, vector<2x256xf32> -> vector<2x256xf32>
    %147 = arith.addf %145, %146 : vector<2x256xf32>
    %148 = arith.negf %147 : vector<2x256xf32>
    %149 = math.exp %148 : vector<2x256xf32>
    %cst_33 = arith.constant 1.000000e+00 : f32
    %150 = vector.broadcast %cst_33 : f32 to vector<2x256xf32>
    %151 = arith.addf %150, %149 : vector<2x256xf32>
    %152 = arith.divf %150, %151 : vector<2x256xf32>
    %153 = math.tanh %147 : vector<2x256xf32>
    %154 = vector.extract_strided_slice %152 {offsets = [0, 0], sizes = [2, 64], strides = [1, 1]} : vector<2x256xf32> to vector<2x64xf32>
    %155 = vector.extract_strided_slice %152 {offsets = [0, 64], sizes = [2, 64], strides = [1, 1]} : vector<2x256xf32> to vector<2x64xf32>
    %156 = vector.extract_strided_slice %153 {offsets = [0, 128], sizes = [2, 64], strides = [1, 1]} : vector<2x256xf32> to vector<2x64xf32>
    %157 = vector.extract_strided_slice %152 {offsets = [0, 192], sizes = [2, 64], strides = [1, 1]} : vector<2x256xf32> to vector<2x64xf32>
    %158 = arith.mulf %155, %140 : vector<2x64xf32>
    %159 = arith.mulf %154, %156 : vector<2x64xf32>
    %160 = arith.addf %158, %159 : vector<2x64xf32>
    %161 = math.tanh %160 : vector<2x64xf32>
    %162 = arith.mulf %157, %161 : vector<2x64xf32>
    %c8_i32 = arith.constant 8 : i32
    %c0_34 = arith.constant 0 : index
    %c0_35 = arith.constant 0 : index
    %163 = vector.load %arg3[%c0_34, %c0_35] : memref<64x4xf32, #tpu.memory_space<vmem>>, vector<64x4xf32>
    %cst_36 = arith.constant dense<0.000000e+00> : vector<2x4xf32>
    %164 = tpu.matmul %162, %163, %cst_36 {dimension_numbers = #tpu.dot_dimension_numbers<[1], [0], [0], [1], [0, 0, 1, 1], [], []>} : vector<2x64xf32>, vector<64x4xf32>, vector<2x4xf32> -> vector<2x4xf32>
    %c0_37 = arith.constant 0 : index
    %c0_38 = arith.constant 0 : index
    %165 = vector.load %arg4[%c0_37, %c0_38] : memref<1x4xf32, #tpu.memory_space<vmem>>, vector<1x4xf32>
    %166 = vector.broadcast %165 : vector<1x4xf32> to vector<2x4xf32>
    %167 = arith.addf %164, %166 : vector<2x4xf32>
    %c0_39 = arith.constant 0 : index
    %c0_40 = arith.constant 0 : index
    %c0_41 = arith.constant 0 : index
    %168 = vector.load %arg0[%c0_39, %c0_40, %c0_41] : memref<8x2x384xf32, #tpu.memory_space<vmem>>, vector<8x2x384xf32>
    %cst_42 = arith.constant dense<0.000000e+00> : vector<2x384xf32>
    %169 = vector.multi_reduction <add>, %168, %cst_42 [0] : vector<8x2x384xf32> to vector<2x384xf32>
    %cst_43 = arith.constant 8.000000e+00 : f32
    %170 = vector.broadcast %cst_43 : f32 to vector<2x384xf32>
    %171 = arith.divf %169, %170 : vector<2x384xf32>
    %c0_44 = arith.constant 0 : index
    %c0_45 = arith.constant 0 : index
    %172 = vector.load %arg5[%c0_44, %c0_45] : memref<384x4xf32, #tpu.memory_space<vmem>>, vector<384x4xf32>
    %cst_46 = arith.constant dense<0.000000e+00> : vector<2x4xf32>
    %173 = tpu.matmul %171, %172, %cst_46 {dimension_numbers = #tpu.dot_dimension_numbers<[1], [0], [0], [1], [0, 0, 1, 1], [], []>} : vector<2x384xf32>, vector<384x4xf32>, vector<2x4xf32> -> vector<2x4xf32>
    %c0_47 = arith.constant 0 : index
    %c0_48 = arith.constant 0 : index
    %174 = vector.load %arg6[%c0_47, %c0_48] : memref<1x4xf32, #tpu.memory_space<vmem>>, vector<1x4xf32>
    %175 = vector.broadcast %174 : vector<1x4xf32> to vector<2x4xf32>
    %176 = arith.addf %173, %175 : vector<2x4xf32>
    %177 = vector.shape_cast %176 : vector<2x4xf32> to vector<1x2x4xf32>
    %cst_49 = arith.constant dense<0xFF800000> : vector<1xf32>
    %178 = vector.multi_reduction <maximumf>, %177, %cst_49 [1, 2] : vector<1x2x4xf32> to vector<1xf32>
    %179 = vector.shape_cast %178 : vector<1xf32> to vector<1x1x1xf32>
    %180 = vector.extract %179[0, 0, 0] : f32 from vector<1x1x1xf32>
    %181 = vector.broadcast %180 : f32 to vector<2x4xf32>
    %182 = arith.subf %176, %181 : vector<2x4xf32>
    %183 = math.exp %182 : vector<2x4xf32>
    %184 = vector.shape_cast %183 : vector<2x4xf32> to vector<1x2x4xf32>
    %cst_50 = arith.constant dense<0.000000e+00> : vector<1xf32>
    %185 = vector.multi_reduction <add>, %184, %cst_50 [1, 2] : vector<1x2x4xf32> to vector<1xf32>
    %186 = vector.shape_cast %185 : vector<1xf32> to vector<1x1x1xf32>
    %187 = vector.extract %186[0, 0, 0] : f32 from vector<1x1x1xf32>
    %188 = math.log %187 : f32
    %189 = arith.addf %180, %188 : f32
    %190 = vector.broadcast %189 : f32 to vector<2x4xf32>
    %191 = arith.subf %176, %190 : vector<2x4xf32>
    %192 = vector.shape_cast %167 : vector<2x4xf32> to vector<1x2x4xf32>
    %cst_51 = arith.constant dense<0xFF800000> : vector<1xf32>
    %193 = vector.multi_reduction <maximumf>, %192, %cst_51 [1, 2] : vector<1x2x4xf32> to vector<1xf32>
    %194 = vector.shape_cast %193 : vector<1xf32> to vector<1x1x1xf32>
    %195 = vector.extract %194[0, 0, 0] : f32 from vector<1x1x1xf32>
    %196 = vector.broadcast %195 : f32 to vector<2x4xf32>
    %197 = arith.subf %167, %196 : vector<2x4xf32>
    %198 = math.exp %197 : vector<2x4xf32>
    %199 = vector.shape_cast %198 : vector<2x4xf32> to vector<1x2x4xf32>
    %cst_52 = arith.constant dense<0.000000e+00> : vector<1xf32>
    %200 = vector.multi_reduction <add>, %199, %cst_52 [1, 2] : vector<1x2x4xf32> to vector<1xf32>
    %201 = vector.shape_cast %200 : vector<1xf32> to vector<1x1x1xf32>
    %202 = vector.extract %201[0, 0, 0] : f32 from vector<1x1x1xf32>
    %203 = math.log %202 : f32
    %204 = arith.addf %195, %203 : f32
    %205 = vector.broadcast %204 : f32 to vector<2x4xf32>
    %206 = arith.subf %167, %205 : vector<2x4xf32>
    %207 = arith.addf %191, %206 : vector<2x4xf32>
    %cst_53 = arith.constant 5.000000e-01 : f32
    %208 = vector.broadcast %cst_53 : f32 to vector<2x4xf32>
    %209 = arith.mulf %208, %207 : vector<2x4xf32>
    %c0_54 = arith.constant 0 : index
    %c0_55 = arith.constant 0 : index
    %210 = vector.load %arg7[%c0_54, %c0_55] : memref<2x4xf32, #tpu.memory_space<vmem>>, vector<2x4xf32>
    tpu.vector_store %arg7[%c0_54, %c0_55], %209 {strides = array<i32>} : memref<2x4xf32, #tpu.memory_space<vmem>>, vector<2x4xf32>,
    return
  }
}

</mosaic_0001>

<llo_original>
// kernel: tpu_custom_call.1
$region0: #{tpu_custom_call.1}
  #allocation0 [shape = 'u32[]', space=smem, size = 0x4, offset = 0x4, fixed_abs, tag = 'smem constant byte address 0x4 - core index']
  #allocation1 [shape = 'u32[144,128]{1,0:T(1,128)}', space=vmem, size = 0x12000, scoped, tag = 'internal scratch']
  %s0 = inlined_call_operand.vmem [shape: f32[8,2,384], index: 0, kind: input, shape index: {}]
  %s1 = inlined_call_operand.vmem [shape: f32[8,2,256], index: 1, kind: input, shape index: {}]
  %s2 = inlined_call_operand.vmem [shape: f32[64,256], index: 2, kind: input, shape index: {}]
  %s3 = inlined_call_operand.vmem [shape: f32[64,4], index: 3, kind: input, shape index: {}]
  %s4 = inlined_call_operand.vmem [shape: f32[1,4], index: 4, kind: input, shape index: {}]
  %s5 = inlined_call_operand.vmem [shape: f32[384,4], index: 5, kind: input, shape index: {}]
  %s6 = inlined_call_operand.vmem [shape: f32[1,4], index: 6, kind: input, shape index: {}]
  %s7 = inlined_call_operand.hbm [shape: f32[2,4], index: 7, kind: output, shape index: {}]
  %s8 = sld [smem:[#allocation0]]
  $region38: #{tpu_custom_call.1} parent=0
    _
  %s10 = ssub.s32 1, %s8
  %s11 = scalar_select 0, %s10, %s8
  $region1: #{tpu_custom_call.1} parent=0
    #allocation2 [shape = 'u8[1024]{0}', space=vmem, size = 0x400, scoped, tag = 'output window, operand 0, single buffered']
    #allocation3 [shape = 's32[1]{0}', space=sflag, size = 0x4, scoped, tag = 'scoped memory for tpu_custom_call.1']
    %12 = vsyncpa [#allocation3], 0
    // Predicated region
    $region2: #{tpu_custom_call.1} parent=1 // pred_check
      _
    $region3: #{tpu_custom_call.1} parent=1 // pred_check_branch
      %14 = sbr.rel (0) target = $region5
    $region4: #{tpu_custom_call.1} parent=1 // pred_region
      _
    $region5: #{tpu_custom_call.1} parent=1 // pred_fallthru
      _
    // Predicated region
    $region6: #{tpu_custom_call.1} parent=1 // pred_check
      _
    $region7: #{tpu_custom_call.1} parent=1 // pred_check_branch
      %16 = sbr.rel (0) target = $region9
    $region8: #{tpu_custom_call.1} parent=1 // pred_region
      _
    $region9: #{tpu_custom_call.1} parent=1 // pred_fallthru
      _
    // Predicated region
    $region10: #{tpu_custom_call.1} parent=1 // pred_check
      _
    $region11: #{tpu_custom_call.1} parent=1 // pred_check_branch
      %18 = sbr.rel (0) target = $region13
    $region12: #{tpu_custom_call.1} parent=1 // pred_region
      _
    $region13: #{tpu_custom_call.1} parent=1 // pred_fallthru
      _
    // Predicated region
    $region14: #{tpu_custom_call.1} parent=1 // pred_check
      _
    $region15: #{tpu_custom_call.1} parent=1 // pred_check_branch
      %20 = sbr.rel (0) target = $region17
    $region16: #{tpu_custom_call.1} parent=1 // pred_region
      _
    $region17: #{tpu_custom_call.1} parent=1 // pred_fallthru
      _
    // Predicated region
    $region18: #{tpu_custom_call.1} parent=1 // pred_check
      _
    $region19: #{tpu_custom_call.1} parent=1 // pred_check_branch
      %22 = sbr.rel (0) target = $region21
    $region20: #{tpu_custom_call.1} parent=1 // pred_region
      _
    $region21: #{tpu_custom_call.1} parent=1 // pred_fallthru
      _
    // Predicated region
    $region22: #{tpu_custom_call.1} parent=1 // pred_check
      _
    $region23: #{tpu_custom_call.1} parent=1 // pred_check_branch
      %24 = sbr.rel (0) target = $region25
    $region24: #{tpu_custom_call.1} parent=1 // pred_region
      _
    $region25: #{tpu_custom_call.1} parent=1 // pred_fallthru
      _
    // Predicated region
    $region26: #{tpu_custom_call.1} parent=1 // pred_check
      _
    $region27: #{tpu_custom_call.1} parent=1 // pred_check_branch
      %26 = sbr.rel (0) target = $region29
    $region28: #{tpu_custom_call.1} parent=1 // pred_region
      _
    $region29: #{tpu_custom_call.1} parent=1 // pred_fallthru
      _
    %v27 = vld [vmem:[%s2] sm:$0xff]
    %v28 = vld [vmem:[%s2 + $0x8] sm:$0xff]
    %v29 = vld [vmem:[%s2 + $0x10] sm:$0xff]
    %v30 = vld [vmem:[%s2 + $0x18] sm:$0xff]
    %v31 = vld [vmem:[%s2 + $0x20] sm:$0xff]
    %v32 = vld [vmem:[%s2 + $0x28] sm:$0xff]
    %v33 = vld [vmem:[%s2 + $0x30] sm:$0xff]
    %v34 = vld [vmem:[%s2 + $0x38] sm:$0xff]
    %v35 = vld [vmem:[%s2 + $0x40] sm:$0xff]
    %v36 = vld [vmem:[%s2 + $0x48] sm:$0xff]
    %v37 = vld [vmem:[%s2 + $0x50] sm:$0xff]
    %v38 = vld [vmem:[%s2 + $0x58] sm:$0xff]
    %v39 = vld [vmem:[%s2 + $0x60] sm:$0xff]
    %v40 = vld [vmem:[%s2 + $0x68] sm:$0xff]
    %v41 = vld [vmem:[%s2 + $0x70] sm:$0xff]
    %v42 = vld [vmem:[%s2 + $0x78] sm:$0xff]
    %v43 = vld [vmem:[%s1] sm:$0xf]
    %vm44 = vcmask 523264
    %v46 = vsel %vm44, 0.0, 0
    %48 = vmatprep.subr.mxu0 %v28
    %49 = vmatpush1.msra.mxu0 %v27
    %50 = vmatprep.subr.mxu0 %v30
    %51 = vmatpush1.msra.mxu0 %v29
    %52 = vmatprep.subr.mxu0 %v32
    %53 = vmatpush1.msra.mxu0 %v31
    %54 = vmatprep.subr.mxu0 %v34
    %55 = vmatpush1.msra.mxu0 %v33
    %56 = vmatprep.subr.mxu0 %v36
    %57 = vmatpush1.msra.mxu0 %v35
    %58 = vmatprep.subr.mxu0 %v38
    %59 = vmatpush1.msra.mxu0 %v37
    %60 = vmatprep.subr.mxu0 %v40
    %61 = vmatpush1.msra.mxu0 %v39
    %62 = vmatprep.subr.mxu0 %v42
    %63 = vmatpush1.msra.mxu0 %v41
    %64 = vmatprep.subr.mxu0 0.0
    %65 = vmatpush1.msra.mxu0 0.0
    %66 = vmatprep.subr.mxu0 0.0
    %67 = vmatpush1.msra.mxu0 0.0
    %68 = vmatprep.subr.mxu0 0.0
    %69 = vmatpush1.msra.mxu0 0.0
    %70 = vmatprep.subr.mxu0 0.0
    %71 = vmatpush1.msra.mxu0 0.0
    %72 = vmatprep.subr.mxu0 0.0
    %73 = vmatpush1.msra.mxu0 0.0
    %74 = vmatprep.subr.mxu0 0.0
    %75 = vmatpush1.msra.mxu0 0.0
    %76 = vmatprep.subr.mxu0 0.0
    %77 = vmatpush1.msra.mxu0 0.0
    %78 = vmatprep.subr.mxu0 0.0
    %79 = vmatpush1.msra.mxu0 0.0
    %80 = vmatprep.subr.mxu0 0.0
    %81 = vmatpush1.msra.mxu0 0.0
    %82 = vmatprep.subr.mxu0 0.0
    %83 = vmatpush1.msra.mxu0 0.0
    %84 = vmatprep.subr.mxu0 0.0
    %85 = vmatpush1.msra.mxu0 0.0
    %86 = vmatprep.subr.mxu0 0.0
    %87 = vmatpush1.msra.mxu0 0.0
    %88 = vmatprep.subr.mxu0 0.0
    %89 = vmatpush1.msra.mxu0 0.0
    %90 = vmatprep.subr.mxu0 0.0
    %91 = vmatpush1.msra.mxu0 0.0
    %92 = vmatprep.subr.mxu0 0.0
    %93 = vmatpush1.msra.mxu0 0.0
    %94 = vmatprep.subr.mxu0 0.0
    %95 = vmatpush1.msra.mxu0 0.0
    %96 = vmatprep.subr.mxu0 0.0
    %97 = vmatpush1.msra.mxu0 0.0
    %98 = vmatprep.subr.mxu0 0.0
    %99 = vmatpush1.msra.mxu0 0.0
    %100 = vmatprep.subr.mxu0 0.0
    %101 = vmatpush1.msra.mxu0 0.0
    %102 = vmatprep.subr.mxu0 0.0
    %103 = vmatpush1.msra.mxu0 0.0
    %104 = vmatprep.subr.mxu0 0.0
    %105 = vmatpush1.msra.mxu0 0.0
    %106 = vmatprep.subr.mxu0 0.0
    %107 = vmatpush1.msra.mxu0 0.0
    %108 = vmatprep.subr.mxu0 0.0
    %109 = vmatpush1.msra.mxu0 0.0
    %110 = vmatprep.subr.mxu0 0.0
    %111 = vmatpush1.msra.mxu0 0.0
    %112 = vmatprep.mubr.f32.mxu0 0.0
    %113 = vmatmul.mubr.f32.gmra.mrb[0].mxu0 %v46
    %v114 = vpop.f32.mrb[0].mxu0
    %v115 = vadd.f32 0.0, %v114
    %v116 = vpop.f32.mrb[0].mxu0
    %v117 = vadd.f32 0.0, %v116
    %118 = vdwg.mxu0
    %v121 = vcombine.low %v115, %v117
    %v123 = vunpack.c.l.s4 1983009808
    %v124 = vunpack.c.0.s8 %v123
    %v125 = vlaneseq
    %v126 = vshrl.u32 %v125, 7
    %v127 = vsub.s32 %v124, %v126
    %v128 = vrot.slane %v121, %v127
    %v130 = vadd.f32 %v43, %v128
    %v131 = vxor.u32 %v130, 2147483648
    %v132 = vmul.f32 %v131, 1.442695
    %v133 = vpow.pop %v132
    %v134 = vadd.f32 %v133, 1.0
    %v135 = vrcp.pop %v134
    %v136 = vmul.f32 1.0, %v135
    %v137 = vtanh.pop %v130
    %v138 = vmul.f32 %v136, 0.0
    %v140 = vrot.slane %v137, 2
    %v142 = vmul.f32 %v136, %v140
    %144 = vrot.lane.b32.xlu0 %v142, 64
    %v145 = vpop.permute.xlu0 %144
    %v147 = vadd.f32 %v138, %v145
    %v148 = vtanh.pop %v147
    %150 = vrot.lane.b32.xlu0 %v136, 64
    %v151 = vpop.permute.xlu0 %150
    %v152 = vrot.slane %v151, 2
    %155 = vrot.lane.b32.xlu0 %v148, 64
    %v156 = vpop.permute.xlu0 %155
    %v158 = vmul.f32 %v152, %v156
    %s159 = scalar_lea.vmem %s1, 4
    %v160 = vld [vmem:[%s159] sm:$0xf]
    %v162 = vsel %vm44, %v158, 0
    %164 = vmatprep.subr.mxu0 %v28
    %165 = vmatpush1.msra.mxu0 %v27
    %166 = vmatprep.subr.mxu0 %v30
    %167 = vmatpush1.msra.mxu0 %v29
    %168 = vmatprep.subr.mxu0 %v32
    %169 = vmatpush1.msra.mxu0 %v31
    %170 = vmatprep.subr.mxu0 %v34
    %171 = vmatpush1.msra.mxu0 %v33
    %172 = vmatprep.subr.mxu0 %v36
    %173 = vmatpush1.msra.mxu0 %v35
    %174 = vmatprep.subr.mxu0 %v38
    %175 = vmatpush1.msra.mxu0 %v37
    %176 = vmatprep.subr.mxu0 %v40
    %177 = vmatpush1.msra.mxu0 %v39
    %178 = vmatprep.subr.mxu0 %v42
    %179 = vmatpush1.msra.mxu0 %v41
    %180 = vmatprep.subr.mxu0 0.0
    %181 = vmatpush1.msra.mxu0 0.0
    %182 = vmatprep.subr.mxu0 0.0
    %183 = vmatpush1.msra.mxu0 0.0
    %184 = vmatprep.subr.mxu0 0.0
    %185 = vmatpush1.msra.mxu0 0.0
    %186 = vmatprep.subr.mxu0 0.0
    %187 = vmatpush1.msra.mxu0 0.0
    %188 = vmatprep.subr.mxu0 0.0
    %189 = vmatpush1.msra.mxu0 0.0
    %190 = vmatprep.subr.mxu0 0.0
    %191 = vmatpush1.msra.mxu0 0.0
    %192 = vmatprep.subr.mxu0 0.0
    %193 = vmatpush1.msra.mxu0 0.0
    %194 = vmatprep.subr.mxu0 0.0
    %195 = vmatpush1.msra.mxu0 0.0
    %196 = vmatprep.subr.mxu0 0.0
    %197 = vmatpush1.msra.mxu0 0.0
    %198 = vmatprep.subr.mxu0 0.0
    %199 = vmatpush1.msra.mxu0 0.0
    %200 = vmatprep.subr.mxu0 0.0
    %201 = vmatpush1.msra.mxu0 0.0
    %202 = vmatprep.subr.mxu0 0.0
    %203 = vmatpush1.msra.mxu0 0.0
    %204 = vmatprep.subr.mxu0 0.0
    %205 = vmatpush1.msra.mxu0 0.0
    %206 = vmatprep.subr.mxu0 0.0
    %207 = vmatpush1.msra.mxu0 0.0
    %208 = vmatprep.subr.mxu0 0.0
    %209 = vmatpush1.msra.mxu0 0.0
    %210 = vmatprep.subr.mxu0 0.0
    %211 = vmatpush1.msra.mxu0 0.0
    %212 = vmatprep.subr.mxu0 0.0
    %213 = vmatpush1.msra.mxu0 0.0
    %214 = vmatprep.subr.mxu0 0.0
    %215 = vmatpush1.msra.mxu0 0.0
    %216 = vmatprep.subr.mxu0 0.0
    %217 = vmatpush1.msra.mxu0 0.0
    %218 = vmatprep.subr.mxu0 0.0
    %219 = vmatpush1.msra.mxu0 0.0
    %220 = vmatprep.subr.mxu0 0.0
    %221 = vmatpush1.msra.mxu0 0.0
    %222 = vmatprep.subr.mxu0 0.0
    %223 = vmatpush1.msra.mxu0 0.0
    %224 = vmatprep.subr.mxu0 0.0
    %225 = vmatpush1.msra.mxu0 0.0
    %226 = vmatprep.subr.mxu0 0.0
    %227 = vmatpush1.msra.mxu0 0.0
    %228 = vmatprep.mubr.f32.mxu0 0.0
    %229 = vmatmul.mubr.f32.gmra.mrb[0].mxu0 %v162
    %v230 = vpop.f32.mrb[0].mxu0
    %v231 = vadd.f32 0.0, %v230
    %v232 = vpop.f32.mrb[0].mxu0
    %v233 = vadd.f32 0.0, %v232
    %234 = vdwg.mxu0
    %v237 = vcombine.low %v231, %v233
    %v239 = vunpack.c.l.s4 1983009808
    %v240 = vunpack.c.0.s8 %v239
    %v241 = vlaneseq
    %v242 = vshrl.u32 %v241, 7
    %v243 = vsub.s32 %v240, %v242
    %v244 = vrot.slane %v237, %v243
    %v246 = vadd.f32 %v160, %v244
    %v247 = vxor.u32 %v246, 2147483648
    %v248 = vmul.f32 %v247, 1.442695
    %v249 = vpow.pop %v248
    %v250 = vadd.f32 %v249, 1.0
    %v251 = vrcp.pop %v250
    %v252 = vmul.f32 1.0, %v251
    %v253 = vtanh.pop %v246
    %v254 = vmul.f32 %v252, %v147
    %v256 = vrot.slane %v253, 2
    %v258 = vmul.f32 %v252, %v256
    %260 = vrot.lane.b32.xlu0 %v258, 64
    %v261 = vpop.permute.xlu0 %260
    %v263 = vadd.f32 %v254, %v261
    %v264 = vtanh.pop %v263
    %266 = vrot.lane.b32.xlu0 %v252, 64
    %v267 = vpop.permute.xlu0 %266
    %v268 = vrot.slane %v267, 2
    %271 = vrot.lane.b32.xlu0 %v264, 64
    %v272 = vpop.permute.xlu0 %271
    %v274 = vmul.f32 %v268, %v272
    %s275 = scalar_lea.vmem %s1, 8
    %v276 = vld [vmem:[%s275] sm:$0xf]
    %v278 = vsel %vm44, %v274, 0
    %280 = vmatprep.subr.mxu0 %v28
    %281 = vmatpush1.msra.mxu0 %v27
    %282 = vmatprep.subr.mxu0 %v30
    %283 = vmatpush1.msra.mxu0 %v29
    %284 = vmatprep.subr.mxu0 %v32
    %285 = vmatpush1.msra.mxu0 %v31
    %286 = vmatprep.subr.mxu0 %v34
    %287 = vmatpush1.msra.mxu0 %v33
    %288 = vmatprep.subr.mxu0 %v36
    %289 = vmatpush1.msra.mxu0 %v35
    %290 = vmatprep.subr.mxu0 %v38
    %291 = vmatpush1.msra.mxu0 %v37
    %292 = vmatprep.subr.mxu0 %v40
    %293 = vmatpush1.msra.mxu0 %v39
    %294 = vmatprep.subr.mxu0 %v42
    %295 = vmatpush1.msra.mxu0 %v41
    %296 = vmatprep.subr.mxu0 0.0
    %297 = vmatpush1.msra.mxu0 0.0
    %298 = vmatprep.subr.mxu0 0.0
    %299 = vmatpush1.msra.mxu0 0.0
    %300 = vmatprep.subr.mxu0 0.0
    %301 = vmatpush1.msra.mxu0 0.0
    %302 = vmatprep.subr.mxu0 0.0
    %303 = vmatpush1.msra.mxu0 0.0
    %304 = vmatprep.subr.mxu0 0.0
    %305 = vmatpush1.msra.mxu0 0.0
    %306 = vmatprep.subr.mxu0 0.0
    %307 = vmatpush1.msra.mxu0 0.0
    %308 = vmatprep.subr.mxu0 0.0
    %309 = vmatpush1.msra.mxu0 0.0
    %310 = vmatprep.subr.mxu0 0.0
    %311 = vmatpush1.msra.mxu0 0.0
    %312 = vmatprep.subr.mxu0 0.0
    %313 = vmatpush1.msra.mxu0 0.0
    %314 = vmatprep.subr.mxu0 0.0
    %315 = vmatpush1.msra.mxu0 0.0
    %316 = vmatprep.subr.mxu0 0.0
    %317 = vmatpush1.msra.mxu0 0.0
    %318 = vmatprep.subr.mxu0 0.0
    %319 = vmatpush1.msra.mxu0 0.0
    %320 = vmatprep.subr.mxu0 0.0
    %321 = vmatpush1.msra.mxu0 0.0
    %322 = vmatprep.subr.mxu0 0.0
    %323 = vmatpush1.msra.mxu0 0.0
    %324 = vmatprep.subr.mxu0 0.0
    %325 = vmatpush1.msra.mxu0 0.0
    %326 = vmatprep.subr.mxu0 0.0
    %327 = vmatpush1.msra.mxu0 0.0
    %328 = vmatprep.subr.mxu0 0.0
    %329 = vmatpush1.msra.mxu0 0.0
    %330 = vmatprep.subr.mxu0 0.0
    %331 = vmatpush1.msra.mxu0 0.0
    %332 = vmatprep.subr.mxu0 0.0
    %333 = vmatpush1.msra.mxu0 0.0
    %334 = vmatprep.subr.mxu0 0.0
    %335 = vmatpush1.msra.mxu0 0.0
    %336 = vmatprep.subr.mxu0 0.0
    %337 = vmatpush1.msra.mxu0 0.0
    %338 = vmatprep.subr.mxu0 0.0
    %339 = vmatpush1.msra.mxu0 0.0
    %340 = vmatprep.subr.mxu0 0.0
    %341 = vmatpush1.msra.mxu0 0.0
    %342 = vmatprep.subr.mxu0 0.0
    %343 = vmatpush1.msra.mxu0 0.0
    %344 = vmatprep.mubr.f32.mxu0 0.0
    %345 = vmatmul.mubr.f32.gmra.mrb[0].mxu0 %v278
    %v346 = vpop.f32.mrb[0].mxu0
    %v347 = vadd.f32 0.0, %v346
    %v348 = vpop.f32.mrb[0].mxu0
    %v349 = vadd.f32 0.0, %v348
    %350 = vdwg.mxu0
    %v353 = vcombine.low %v347, %v349
    %v355 = vunpack.c.l.s4 1983009808
    %v356 = vunpack.c.0.s8 %v355
    %v357 = vlaneseq
    %v358 = vshrl.u32 %v357, 7
    %v359 = vsub.s32 %v356, %v358
    %v360 = vrot.slane %v353, %v359
    %v362 = vadd.f32 %v276, %v360
    %v363 = vxor.u32 %v362, 2147483648
    %v364 = vmul.f32 %v363, 1.442695
    %v365 = vpow.pop %v364
    %v366 = vadd.f32 %v365, 1.0
    %v367 = vrcp.pop %v366
    %v368 = vmul.f32 1.0, %v367
    %v369 = vtanh.pop %v362
    %v370 = vmul.f32 %v368, %v263
    %v372 = vrot.slane %v369, 2
    %v374 = vmul.f32 %v368, %v372
    %376 = vrot.lane.b32.xlu0 %v374, 64
    %v377 = vpop.permute.xlu0 %376
    %v379 = vadd.f32 %v370, %v377
    %v380 = vtanh.pop %v379
    %382 = vrot.lane.b32.xlu0 %v368, 64
    %v383 = vpop.permute.xlu0 %382
    %v384 = vrot.slane %v383, 2
    %387 = vrot.lane.b32.xlu0 %v380, 64
    %v388 = vpop.permute.xlu0 %387
    %v390 = vmul.f32 %v384, %v388
    %s391 = scalar_lea.vmem %s1, 12
    %v392 = vld [vmem:[%s391] sm:$0xf]
    %v394 = vsel %vm44, %v390, 0
    %396 = vmatprep.subr.mxu0 %v28
    %397 = vmatpush1.msra.mxu0 %v27
    %398 = vmatprep.subr.mxu0 %v30
    %399 = vmatpush1.msra.mxu0 %v29
    %400 = vmatprep.subr.mxu0 %v32
    %401 = vmatpush1.msra.mxu0 %v31
    %402 = vmatprep.subr.mxu0 %v34
    %403 = vmatpush1.msra.mxu0 %v33
    %404 = vmatprep.subr.mxu0 %v36
    %405 = vmatpush1.msra.mxu0 %v35
    %406 = vmatprep.subr.mxu0 %v38
    %407 = vmatpush1.msra.mxu0 %v37
    %408 = vmatprep.subr.mxu0 %v40
    %409 = vmatpush1.msra.mxu0 %v39
    %410 = vmatprep.subr.mxu0 %v42
    %411 = vmatpush1.msra.mxu0 %v41
    %412 = vmatprep.subr.mxu0 0.0
    %413 = vmatpush1.msra.mxu0 0.0
    %414 = vmatprep.subr.mxu0 0.0
    %415 = vmatpush1.msra.mxu0 0.0
    %416 = vmatprep.subr.mxu0 0.0
    %417 = vmatpush1.msra.mxu0 0.0
    %418 = vmatprep.subr.mxu0 0.0
    %419 = vmatpush1.msra.mxu0 0.0
    %420 = vmatprep.subr.mxu0 0.0
    %421 = vmatpush1.msra.mxu0 0.0
    %422 = vmatprep.subr.mxu0 0.0
    %423 = vmatpush1.msra.mxu0 0.0
    %424 = vmatprep.subr.mxu0 0.0
    %425 = vmatpush1.msra.mxu0 0.0
    %426 = vmatprep.subr.mxu0 0.0
    %427 = vmatpush1.msra.mxu0 0.0
    %428 = vmatprep.subr.mxu0 0.0
    %429 = vmatpush1.msra.mxu0 0.0
    %430 = vmatprep.subr.mxu0 0.0
    %431 = vmatpush1.msra.mxu0 0.0
    %432 = vmatprep.subr.mxu0 0.0
    %433 = vmatpush1.msra.mxu0 0.0
    %434 = vmatprep.subr.mxu0 0.0
    %435 = vmatpush1.msra.mxu0 0.0
    %436 = vmatprep.subr.mxu0 0.0
    %437 = vmatpush1.msra.mxu0 0.0
    %438 = vmatprep.subr.mxu0 0.0
    %439 = vmatpush1.msra.mxu0 0.0
    %440 = vmatprep.subr.mxu0 0.0
    %441 = vmatpush1.msra.mxu0 0.0
    %442 = vmatprep.subr.mxu0 0.0
    %443 = vmatpush1.msra.mxu0 0.0
    %444 = vmatprep.subr.mxu0 0.0
    %445 = vmatpush1.msra.mxu0 0.0
    %446 = vmatprep.subr.mxu0 0.0
    %447 = vmatpush1.msra.mxu0 0.0
    %448 = vmatprep.subr.mxu0 0.0
    %449 = vmatpush1.msra.mxu0 0.0
    %450 = vmatprep.subr.mxu0 0.0
    %451 = vmatpush1.msra.mxu0 0.0
    %452 = vmatprep.subr.mxu0 0.0
    %453 = vmatpush1.msra.mxu0 0.0
    %454 = vmatprep.subr.mxu0 0.0
    %455 = vmatpush1.msra.mxu0 0.0
    %456 = vmatprep.subr.mxu0 0.0
    %457 = vmatpush1.msra.mxu0 0.0
    %458 = vmatprep.subr.mxu0 0.0
    %459 = vmatpush1.msra.mxu0 0.0
    %460 = vmatprep.mubr.f32.mxu0 0.0
    %461 = vmatmul.mubr.f32.gmra.mrb[0].mxu0 %v394
    %v462 = vpop.f32.mrb[0].mxu0
    %v463 = vadd.f32 0.0, %v462
    %v464 = vpop.f32.mrb[0].mxu0
    %v465 = vadd.f32 0.0, %v464
    %466 = vdwg.mxu0
    %v469 = vcombine.low %v463, %v465
    %v471 = vunpack.c.l.s4 1983009808
    %v472 = vunpack.c.0.s8 %v471
    %v473 = vlaneseq
    %v474 = vshrl.u32 %v473, 7
    %v475 = vsub.s32 %v472, %v474
    %v476 = vrot.slane %v469, %v475
    %v478 = vadd.f32 %v392, %v476
    %v479 = vxor.u32 %v478, 2147483648
    %v480 = vmul.f32 %v479, 1.442695
    %v481 = vpow.pop %v480
    %v482 = vadd.f32 %v481, 1.0
    %v483 = vrcp.pop %v482
    %v484 = vmul.f32 1.0, %v483
    %v485 = vtanh.pop %v478
    %v486 = vmul.f32 %v484, %v379
    %v488 = vrot.slane %v485, 2
    %v490 = vmul.f32 %v484, %v488
    %492 = vrot.lane.b32.xlu0 %v490, 64
    %v493 = vpop.permute.xlu0 %492
    %v495 = vadd.f32 %v486, %v493
    %v496 = vtanh.pop %v495
    %498 = vrot.lane.b32.xlu0 %v484, 64
    %v499 = vpop.permute.xlu0 %498
    %v500 = vrot.slane %v499, 2
    %503 = vrot.lane.b32.xlu0 %v496, 64
    %v504 = vpop.permute.xlu0 %503
    %v506 = vmul.f32 %v500, %v504
    %s507 = scalar_lea.vmem %s1, 16
    %v508 = vld [vmem:[%s507] sm:$0xf]
    %v510 = vsel %vm44, %v506, 0
    %512 = vmatprep.subr.mxu0 %v28
    %513 = vmatpush1.msra.mxu0 %v27
    %514 = vmatprep.subr.mxu0 %v30
    %515 = vmatpush1.msra.mxu0 %v29
    %516 = vmatprep.subr.mxu0 %v32
    %517 = vmatpush1.msra.mxu0 %v31
    %518 = vmatprep.subr.mxu0 %v34
    %519 = vmatpush1.msra.mxu0 %v33
    %520 = vmatprep.subr.mxu0 %v36
    %521 = vmatpush1.msra.mxu0 %v35
    %522 = vmatprep.subr.mxu0 %v38
    %523 = vmatpush1.msra.mxu0 %v37
    %524 = vmatprep.subr.mxu0 %v40
    %525 = vmatpush1.msra.mxu0 %v39
    %526 = vmatprep.subr.mxu0 %v42
    %527 = vmatpush1.msra.mxu0 %v41
    %528 = vmatprep.subr.mxu0 0.0
    %529 = vmatpush1.msra.mxu0 0.0
    %530 = vmatprep.subr.mxu0 0.0
    %531 = vmatpush1.msra.mxu0 0.0
    %532 = vmatprep.subr.mxu0 0.0
    %533 = vmatpush1.msra.mxu0 0.0
    %534 = vmatprep.subr.mxu0 0.0
    %535 = vmatpush1.msra.mxu0 0.0
    %536 = vmatprep.subr.mxu0 0.0
    %537 = vmatpush1.msra.mxu0 0.0
    %538 = vmatprep.subr.mxu0 0.0
    %539 = vmatpush1.msra.mxu0 0.0
    %540 = vmatprep.subr.mxu0 0.0
    %541 = vmatpush1.msra.mxu0 0.0
    %542 = vmatprep.subr.mxu0 0.0
    %543 = vmatpush1.msra.mxu0 0.0
    %544 = vmatprep.subr.mxu0 0.0
    %545 = vmatpush1.msra.mxu0 0.0
    %546 = vmatprep.subr.mxu0 0.0
    %547 = vmatpush1.msra.mxu0 0.0
    %548 = vmatprep.subr.mxu0 0.0
    %549 = vmatpush1.msra.mxu0 0.0
    %550 = vmatprep.subr.mxu0 0.0
    %551 = vmatpush1.msra.mxu0 0.0
    %552 = vmatprep.subr.mxu0 0.0
    %553 = vmatpush1.msra.mxu0 0.0
    %554 = vmatprep.subr.mxu0 0.0
    %555 = vmatpush1.msra.mxu0 0.0
    %556 = vmatprep.subr.mxu0 0.0
    %557 = vmatpush1.msra.mxu0 0.0
    %558 = vmatprep.subr.mxu0 0.0
    %559 = vmatpush1.msra.mxu0 0.0
    %560 = vmatprep.subr.mxu0 0.0
    %561 = vmatpush1.msra.mxu0 0.0
    %562 = vmatprep.subr.mxu0 0.0
    %563 = vmatpush1.msra.mxu0 0.0
    %564 = vmatprep.subr.mxu0 0.0
    %565 = vmatpush1.msra.mxu0 0.0
    %566 = vmatprep.subr.mxu0 0.0
    %567 = vmatpush1.msra.mxu0 0.0
    %568 = vmatprep.subr.mxu0 0.0
    %569 = vmatpush1.msra.mxu0 0.0
    %570 = vmatprep.subr.mxu0 0.0
    %571 = vmatpush1.msra.mxu0 0.0
    %572 = vmatprep.subr.mxu0 0.0
    %573 = vmatpush1.msra.mxu0 0.0
    %574 = vmatprep.subr.mxu0 0.0
    %575 = vmatpush1.msra.mxu0 0.0
    %576 = vmatprep.mubr.f32.mxu0 0.0
    %577 = vmatmul.mubr.f32.gmra.mrb[0].mxu0 %v510
    %v578 = vpop.f32.mrb[0].mxu0
    %v579 = vadd.f32 0.0, %v578
    %v580 = vpop.f32.mrb[0].mxu0
    %v581 = vadd.f32 0.0, %v580
    %582 = vdwg.mxu0
    %v585 = vcombine.low %v579, %v581
    %v587 = vunpack.c.l.s4 1983009808
    %v588 = vunpack.c.0.s8 %v587
    %v589 = vlaneseq
    %v590 = vshrl.u32 %v589, 7
    %v591 = vsub.s32 %v588, %v590
    %v592 = vrot.slane %v585, %v591
    %v594 = vadd.f32 %v508, %v592
    %v595 = vxor.u32 %v594, 2147483648
    %v596 = vmul.f32 %v595, 1.442695
    %v597 = vpow.pop %v596
    %v598 = vadd.f32 %v597, 1.0
    %v599 = vrcp.pop %v598
    %v600 = vmul.f32 1.0, %v599
    %v601 = vtanh.pop %v594
    %v602 = vmul.f32 %v600, %v495
    %v604 = vrot.slane %v601, 2
    %v606 = vmul.f32 %v600, %v604
    %608 = vrot.lane.b32.xlu0 %v606, 64
    %v609 = vpop.permute.xlu0 %608
    %v611 = vadd.f32 %v602, %v609
    %v612 = vtanh.pop %v611
    %614 = vrot.lane.b32.xlu0 %v600, 64
    %v615 = vpop.permute.xlu0 %614
    %v616 = vrot.slane %v615, 2
    %619 = vrot.lane.b32.xlu0 %v612, 64
    %v620 = vpop.permute.xlu0 %619
    %v622 = vmul.f32 %v616, %v620
    %s623 = scalar_lea.vmem %s1, 20
    %v624 = vld [vmem:[%s623] sm:$0xf]
    %v626 = vsel %vm44, %v622, 0
    %628 = vmatprep.subr.mxu0 %v28
    %629 = vmatpush1.msra.mxu0 %v27
    %630 = vmatprep.subr.mxu0 %v30
    %631 = vmatpush1.msra.mxu0 %v29
    %632 = vmatprep.subr.mxu0 %v32
    %633 = vmatpush1.msra.mxu0 %v31
    %634 = vmatprep.subr.mxu0 %v34
    %635 = vmatpush1.msra.mxu0 %v33
    %636 = vmatprep.subr.mxu0 %v36
    %637 = vmatpush1.msra.mxu0 %v35
    %638 = vmatprep.subr.mxu0 %v38
    %639 = vmatpush1.msra.mxu0 %v37
    %640 = vmatprep.subr.mxu0 %v40
    %641 = vmatpush1.msra.mxu0 %v39
    %642 = vmatprep.subr.mxu0 %v42
    %643 = vmatpush1.msra.mxu0 %v41
    %644 = vmatprep.subr.mxu0 0.0
    %645 = vmatpush1.msra.mxu0 0.0
    %646 = vmatprep.subr.mxu0 0.0
    %647 = vmatpush1.msra.mxu0 0.0
    %648 = vmatprep.subr.mxu0 0.0
    %649 = vmatpush1.msra.mxu0 0.0
    %650 = vmatprep.subr.mxu0 0.0
    %651 = vmatpush1.msra.mxu0 0.0
    %652 = vmatprep.subr.mxu0 0.0
    %653 = vmatpush1.msra.mxu0 0.0
    %654 = vmatprep.subr.mxu0 0.0
    %655 = vmatpush1.msra.mxu0 0.0
    %656 = vmatprep.subr.mxu0 0.0
    %657 = vmatpush1.msra.mxu0 0.0
    %658 = vmatprep.subr.mxu0 0.0
    %659 = vmatpush1.msra.mxu0 0.0
    %660 = vmatprep.subr.mxu0 0.0
    %661 = vmatpush1.msra.mxu0 0.0
    %662 = vmatprep.subr.mxu0 0.0
    %663 = vmatpush1.msra.mxu0 0.0
    %664 = vmatprep.subr.mxu0 0.0
    %665 = vmatpush1.msra.mxu0 0.0
    %666 = vmatprep.subr.mxu0 0.0
    %667 = vmatpush1.msra.mxu0 0.0
    %668 = vmatprep.subr.mxu0 0.0
    %669 = vmatpush1.msra.mxu0 0.0
    %670 = vmatprep.subr.mxu0 0.0
    %671 = vmatpush1.msra.mxu0 0.0
    %672 = vmatprep.subr.mxu0 0.0
    %673 = vmatpush1.msra.mxu0 0.0
    %674 = vmatprep.subr.mxu0 0.0
    %675 = vmatpush1.msra.mxu0 0.0
    %676 = vmatprep.subr.mxu0 0.0
    %677 = vmatpush1.msra.mxu0 0.0
    %678 = vmatprep.subr.mxu0 0.0
    %679 = vmatpush1.msra.mxu0 0.0
    %680 = vmatprep.subr.mxu0 0.0
    %681 = vmatpush1.msra.mxu0 0.0
    %682 = vmatprep.subr.mxu0 0.0
    %683 = vmatpush1.msra.mxu0 0.0
    %684 = vmatprep.subr.mxu0 0.0
    %685 = vmatpush1.msra.mxu0 0.0
    %686 = vmatprep.subr.mxu0 0.0
    %687 = vmatpush1.msra.mxu0 0.0
    %688 = vmatprep.subr.mxu0 0.0
    %689 = vmatpush1.msra.mxu0 0.0
    %690 = vmatprep.subr.mxu0 0.0
    %691 = vmatpush1.msra.mxu0 0.0
    %692 = vmatprep.mubr.f32.mxu0 0.0
    %693 = vmatmul.mubr.f32.gmra.mrb[0].mxu0 %v626
    %v694 = vpop.f32.mrb[0].mxu0
    %v695 = vadd.f32 0.0, %v694
    %v696 = vpop.f32.mrb[0].mxu0
    %v697 = vadd.f32 0.0, %v696
    %698 = vdwg.mxu0
    %v701 = vcombine.low %v695, %v697
    %v703 = vunpack.c.l.s4 1983009808
    %v704 = vunpack.c.0.s8 %v703
    %v705 = vlaneseq
    %v706 = vshrl.u32 %v705, 7
    %v707 = vsub.s32 %v704, %v706
    %v708 = vrot.slane %v701, %v707
    %v710 = vadd.f32 %v624, %v708
    %v711 = vxor.u32 %v710, 2147483648
    %v712 = vmul.f32 %v711, 1.442695
    %v713 = vpow.pop %v712
    %v714 = vadd.f32 %v713, 1.0
    %v715 = vrcp.pop %v714
    %v716 = vmul.f32 1.0, %v715
    %v717 = vtanh.pop %v710
    %v718 = vmul.f32 %v716, %v611
    %v720 = vrot.slane %v717, 2
    %v722 = vmul.f32 %v716, %v720
    %724 = vrot.lane.b32.xlu0 %v722, 64
    %v725 = vpop.permute.xlu0 %724
    %v727 = vadd.f32 %v718, %v725
    %v728 = vtanh.pop %v727
    %730 = vrot.lane.b32.xlu0 %v716, 64
    %v731 = vpop.permute.xlu0 %730
    %v732 = vrot.slane %v731, 2
    %735 = vrot.lane.b32.xlu0 %v728, 64
    %v736 = vpop.permute.xlu0 %735
    %v738 = vmul.f32 %v732, %v736
    %s739 = scalar_lea.vmem %s1, 24
    %v740 = vld [vmem:[%s739] sm:$0xf]
    %v742 = vsel %vm44, %v738, 0
    %744 = vmatprep.subr.mxu0 %v28
    %745 = vmatpush1.msra.mxu0 %v27
    %746 = vmatprep.subr.mxu0 %v30
    %747 = vmatpush1.msra.mxu0 %v29
    %748 = vmatprep.subr.mxu0 %v32
    %749 = vmatpush1.msra.mxu0 %v31
    %750 = vmatprep.subr.mxu0 %v34
    %751 = vmatpush1.msra.mxu0 %v33
    %752 = vmatprep.subr.mxu0 %v36
    %753 = vmatpush1.msra.mxu0 %v35
    %754 = vmatprep.subr.mxu0 %v38
    %755 = vmatpush1.msra.mxu0 %v37
    %756 = vmatprep.subr.mxu0 %v40
    %757 = vmatpush1.msra.mxu0 %v39
    %758 = vmatprep.subr.mxu0 %v42
    %759 = vmatpush1.msra.mxu0 %v41
    %760 = vmatprep.subr.mxu0 0.0
    %761 = vmatpush1.msra.mxu0 0.0
    %762 = vmatprep.subr.mxu0 0.0
    %763 = vmatpush1.msra.mxu0 0.0
    %764 = vmatprep.subr.mxu0 0.0
    %765 = vmatpush1.msra.mxu0 0.0
    %766 = vmatprep.subr.mxu0 0.0
    %767 = vmatpush1.msra.mxu0 0.0
    %768 = vmatprep.subr.mxu0 0.0
    %769 = vmatpush1.msra.mxu0 0.0
    %770 = vmatprep.subr.mxu0 0.0
    %771 = vmatpush1.msra.mxu0 0.0
    %772 = vmatprep.subr.mxu0 0.0
    %773 = vmatpush1.msra.mxu0 0.0
    %774 = vmatprep.subr.mxu0 0.0
    %775 = vmatpush1.msra.mxu0 0.0
    %776 = vmatprep.subr.mxu0 0.0
    %777 = vmatpush1.msra.mxu0 0.0
    %778 = vmatprep.subr.mxu0 0.0
    %779 = vmatpush1.msra.mxu0 0.0
    %780 = vmatprep.subr.mxu0 0.0
    %781 = vmatpush1.msra.mxu0 0.0
    %782 = vmatprep.subr.mxu0 0.0
    %783 = vmatpush1.msra.mxu0 0.0
    %784 = vmatprep.subr.mxu0 0.0
    %785 = vmatpush1.msra.mxu0 0.0
    %786 = vmatprep.subr.mxu0 0.0
    %787 = vmatpush1.msra.mxu0 0.0
    %788 = vmatprep.subr.mxu0 0.0
    %789 = vmatpush1.msra.mxu0 0.0
    %790 = vmatprep.subr.mxu0 0.0
    %791 = vmatpush1.msra.mxu0 0.0
    %792 = vmatprep.subr.mxu0 0.0
    %793 = vmatpush1.msra.mxu0 0.0
    %794 = vmatprep.subr.mxu0 0.0
    %795 = vmatpush1.msra.mxu0 0.0
    %796 = vmatprep.subr.mxu0 0.0
    %797 = vmatpush1.msra.mxu0 0.0
    %798 = vmatprep.subr.mxu0 0.0
    %799 = vmatpush1.msra.mxu0 0.0
    %800 = vmatprep.subr.mxu0 0.0
    %801 = vmatpush1.msra.mxu0 0.0
    %802 = vmatprep.subr.mxu0 0.0
    %803 = vmatpush1.msra.mxu0 0.0
    %804 = vmatprep.subr.mxu0 0.0
    %805 = vmatpush1.msra.mxu0 0.0
    %806 = vmatprep.subr.mxu0 0.0
    %807 = vmatpush1.msra.mxu0 0.0
    %808 = vmatprep.mubr.f32.mxu0 0.0
    %809 = vmatmul.mubr.f32.gmra.mrb[0].mxu0 %v742
    %v810 = vpop.f32.mrb[0].mxu0
    %v811 = vadd.f32 0.0, %v810
    %v812 = vpop.f32.mrb[0].mxu0
    %v813 = vadd.f32 0.0, %v812
    %814 = vdwg.mxu0
    %v817 = vcombine.low %v811, %v813
    %v819 = vunpack.c.l.s4 1983009808
    %v820 = vunpack.c.0.s8 %v819
    %v821 = vlaneseq
    %v822 = vshrl.u32 %v821, 7
    %v823 = vsub.s32 %v820, %v822
    %v824 = vrot.slane %v817, %v823
    %v826 = vadd.f32 %v740, %v824
    %v827 = vxor.u32 %v826, 2147483648
    %v828 = vmul.f32 %v827, 1.442695
    %v829 = vpow.pop %v828
    %v830 = vadd.f32 %v829, 1.0
    %v831 = vrcp.pop %v830
    %v832 = vmul.f32 1.0, %v831
    %v833 = vtanh.pop %v826
    %v834 = vmul.f32 %v832, %v727
    %v836 = vrot.slane %v833, 2
    %v838 = vmul.f32 %v832, %v836
    %840 = vrot.lane.b32.xlu0 %v838, 64
    %v841 = vpop.permute.xlu0 %840
    %v843 = vadd.f32 %v834, %v841
    %v844 = vtanh.pop %v843
    %846 = vrot.lane.b32.xlu0 %v832, 64
    %v847 = vpop.permute.xlu0 %846
    %v848 = vrot.slane %v847, 2
    %851 = vrot.lane.b32.xlu0 %v844, 64
    %v852 = vpop.permute.xlu0 %851
    %v854 = vmul.f32 %v848, %v852
    %s855 = scalar_lea.vmem %s1, 28
    %v856 = vld [vmem:[%s855] sm:$0xf]
    %v858 = vsel %vm44, %v854, 0
    %860 = vmatprep.subr.mxu0 %v28
    %861 = vmatpush1.msra.mxu0 %v27
    %862 = vmatprep.subr.mxu0 %v30
    %863 = vmatpush1.msra.mxu0 %v29
    %864 = vmatprep.subr.mxu0 %v32
    %865 = vmatpush1.msra.mxu0 %v31
    %866 = vmatprep.subr.mxu0 %v34
    %867 = vmatpush1.msra.mxu0 %v33
    %868 = vmatprep.subr.mxu0 %v36
    %869 = vmatpush1.msra.mxu0 %v35
    %870 = vmatprep.subr.mxu0 %v38
    %871 = vmatpush1.msra.mxu0 %v37
    %872 = vmatprep.subr.mxu0 %v40
    %873 = vmatpush1.msra.mxu0 %v39
    %874 = vmatprep.subr.mxu0 %v42
    %875 = vmatpush1.msra.mxu0 %v41
    %876 = vmatprep.subr.mxu0 0.0
    %877 = vmatpush1.msra.mxu0 0.0
    %878 = vmatprep.subr.mxu0 0.0
    %879 = vmatpush1.msra.mxu0 0.0
    %880 = vmatprep.subr.mxu0 0.0
    %881 = vmatpush1.msra.mxu0 0.0
    %882 = vmatprep.subr.mxu0 0.0
    %883 = vmatpush1.msra.mxu0 0.0
    %884 = vmatprep.subr.mxu0 0.0
    %885 = vmatpush1.msra.mxu0 0.0
    %886 = vmatprep.subr.mxu0 0.0
    %887 = vmatpush1.msra.mxu0 0.0
    %888 = vmatprep.subr.mxu0 0.0
    %889 = vmatpush1.msra.mxu0 0.0
    %890 = vmatprep.subr.mxu0 0.0
    %891 = vmatpush1.msra.mxu0 0.0
    %892 = vmatprep.subr.mxu0 0.0
    %893 = vmatpush1.msra.mxu0 0.0
    %894 = vmatprep.subr.mxu0 0.0
    %895 = vmatpush1.msra.mxu0 0.0
    %896 = vmatprep.subr.mxu0 0.0
    %897 = vmatpush1.msra.mxu0 0.0
    %898 = vmatprep.subr.mxu0 0.0
    %899 = vmatpush1.msra.mxu0 0.0
    %900 = vmatprep.subr.mxu0 0.0
    %901 = vmatpush1.msra.mxu0 0.0
    %902 = vmatprep.subr.mxu0 0.0
    %903 = vmatpush1.msra.mxu0 0.0
    %904 = vmatprep.subr.mxu0 0.0
    %905 = vmatpush1.msra.mxu0 0.0
    %906 = vmatprep.subr.mxu0 0.0
    %907 = vmatpush1.msra.mxu0 0.0
    %908 = vmatprep.subr.mxu0 0.0
    %909 = vmatpush1.msra.mxu0 0.0
    %910 = vmatprep.subr.mxu0 0.0
    %911 = vmatpush1.msra.mxu0 0.0
    %912 = vmatprep.subr.mxu0 0.0
    %913 = vmatpush1.msra.mxu0 0.0
    %914 = vmatprep.subr.mxu0 0.0
    %915 = vmatpush1.msra.mxu0 0.0
    %916 = vmatprep.subr.mxu0 0.0
    %917 = vmatpush1.msra.mxu0 0.0
    %918 = vmatprep.subr.mxu0 0.0
    %919 = vmatpush1.msra.mxu0 0.0
    %920 = vmatprep.subr.mxu0 0.0
    %921 = vmatpush1.msra.mxu0 0.0
    %922 = vmatprep.subr.mxu0 0.0
    %923 = vmatpush1.msra.mxu0 0.0
    %924 = vmatprep.mubr.f32.mxu0 0.0
    %925 = vmatmul.mubr.f32.gmra.mrb[0].mxu0 %v858
    %v926 = vpop.f32.mrb[0].mxu0
    %v927 = vadd.f32 0.0, %v926
    %v928 = vpop.f32.mrb[0].mxu0
    %v929 = vadd.f32 0.0, %v928
    %930 = vdwg.mxu0
    %v933 = vcombine.low %v927, %v929
    %v935 = vunpack.c.l.s4 1983009808
    %v936 = vunpack.c.0.s8 %v935
    %v937 = vlaneseq
    %v938 = vshrl.u32 %v937, 7
    %v939 = vsub.s32 %v936, %v938
    %v940 = vrot.slane %v933, %v939
    %v942 = vadd.f32 %v856, %v940
    %v943 = vxor.u32 %v942, 2147483648
    %v944 = vmul.f32 %v943, 1.442695
    %v945 = vpow.pop %v944
    %v946 = vadd.f32 %v945, 1.0
    %v947 = vrcp.pop %v946
    %v948 = vmul.f32 1.0, %v947
    %v949 = vtanh.pop %v942
    %v950 = vmul.f32 %v948, %v843
    %v952 = vrot.slane %v949, 2
    %v954 = vmul.f32 %v948, %v952
    %956 = vrot.lane.b32.xlu0 %v954, 64
    %v957 = vpop.permute.xlu0 %956
    %v959 = vadd.f32 %v950, %v957
    %v960 = vtanh.pop %v959
    %962 = vrot.lane.b32.xlu0 %v948, 64
    %v963 = vpop.permute.xlu0 %962
    %v964 = vrot.slane %v963, 2
    %967 = vrot.lane.b32.xlu0 %v960, 64
    %v968 = vpop.permute.xlu0 %967
    %v970 = vmul.f32 %v964, %v968
    %v971 = vld [vmem:[%s3] sm:$0xff]
    %v972 = vld [vmem:[%s3 + $0x8] sm:$0xff]
    %v973 = vld [vmem:[%s3 + $0x10] sm:$0xff]
    %v974 = vld [vmem:[%s3 + $0x18] sm:$0xff]
    %v975 = vld [vmem:[%s3 + $0x20] sm:$0xff]
    %v976 = vld [vmem:[%s3 + $0x28] sm:$0xff]
    %v977 = vld [vmem:[%s3 + $0x30] sm:$0xff]
    %v978 = vld [vmem:[%s3 + $0x38] sm:$0xff]
    %v979 = vld [vmem:[%s4] sm:$0x1]
    %v981 = vlaneseq
    %v982 = vshrl.u32 %v981, 7
    %v983 = vsub.s32 0, %v982
    %v984 = vrot.slane %v979, %v983
    %v987 = vsel %vm44, %v970, 0
    %989 = vmatprep.subr.mxu0 0.0
    %990 = vmatpush1.msra.mxu0 %v971
    %991 = vmatprep.subr.mxu0 0.0
    %992 = vmatpush1.msra.mxu0 %v972
    %993 = vmatprep.subr.mxu0 0.0
    %994 = vmatpush1.msra.mxu0 %v973
    %995 = vmatprep.subr.mxu0 0.0
    %996 = vmatpush1.msra.mxu0 %v974
    %997 = vmatprep.subr.mxu0 0.0
    %998 = vmatpush1.msra.mxu0 %v975
    %999 = vmatprep.subr.mxu0 0.0
    %1000 = vmatpush1.msra.mxu0 %v976
    %1001 = vmatprep.subr.mxu0 0.0
    %1002 = vmatpush1.msra.mxu0 %v977
    %1003 = vmatprep.subr.mxu0 0.0
    %1004 = vmatpush1.msra.mxu0 %v978
    %1005 = vmatprep.subr.mxu0 0.0
    %1006 = vmatpush1.msra.mxu0 0.0
    %1007 = vmatprep.subr.mxu0 0.0
    %1008 = vmatpush1.msra.mxu0 0.0
    %1009 = vmatprep.subr.mxu0 0.0
    %1010 = vmatpush1.msra.mxu0 0.0
    %1011 = vmatprep.subr.mxu0 0.0
    %1012 = vmatpush1.msra.mxu0 0.0
    %1013 = vmatprep.subr.mxu0 0.0
    %1014 = vmatpush1.msra.mxu0 0.0
    %1015 = vmatprep.subr.mxu0 0.0
    %1016 = vmatpush1.msra.mxu0 0.0
    %1017 = vmatprep.subr.mxu0 0.0
    %1018 = vmatpush1.msra.mxu0 0.0
    %1019 = vmatprep.subr.mxu0 0.0
    %1020 = vmatpush1.msra.mxu0 0.0
    %1021 = vmatprep.subr.mxu0 0.0
    %1022 = vmatpush1.msra.mxu0 0.0
    %1023 = vmatprep.subr.mxu0 0.0
    %1024 = vmatpush1.msra.mxu0 0.0
    %1025 = vmatprep.subr.mxu0 0.0
    %1026 = vmatpush1.msra.mxu0 0.0
    %1027 = vmatprep.subr.mxu0 0.0
    %1028 = vmatpush1.msra.mxu0 0.0
    %1029 = vmatprep.subr.mxu0 0.0
    %1030 = vmatpush1.msra.mxu0 0.0
    %1031 = vmatprep.subr.mxu0 0.0
    %1032 = vmatpush1.msra.mxu0 0.0
    %1033 = vmatprep.subr.mxu0 0.0
    %1034 = vmatpush1.msra.mxu0 0.0
    %1035 = vmatprep.subr.mxu0 0.0
    %1036 = vmatpush1.msra.mxu0 0.0
    %1037 = vmatprep.subr.mxu0 0.0
    %1038 = vmatpush1.msra.mxu0 0.0
    %1039 = vmatprep.subr.mxu0 0.0
    %1040 = vmatpush1.msra.mxu0 0.0
    %1041 = vmatprep.subr.mxu0 0.0
    %1042 = vmatpush1.msra.mxu0 0.0
    %1043 = vmatprep.subr.mxu0 0.0
    %1044 = vmatpush1.msra.mxu0 0.0
    %1045 = vmatprep.subr.mxu0 0.0
    %1046 = vmatpush1.msra.mxu0 0.0
    %1047 = vmatprep.subr.mxu0 0.0
    %1048 = vmatpush1.msra.mxu0 0.0
    %1049 = vmatprep.subr.mxu0 0.0
    %1050 = vmatpush1.msra.mxu0 0.0
    %1051 = vmatprep.subr.mxu0 0.0
    %1052 = vmatpush1.msra.mxu0 0.0
    %1053 = vmatprep.mubr.f32.mxu0 0.0
    %1054 = vmatmul.mubr.f32.gmra.mrb[0].mxu0 %v987
    %v1055 = vpop.f32.mrb[0].mxu0
    %v1056 = vadd.f32 %v984, %v1055
    %v1057 = vpop.f32.mrb[0].mxu0
    %1058 = vdwg.mxu0
    %v1059 = vld [vmem:[%s0] sm:$0x3f]
    %v1060 = vld [vmem:[%s0 + $0x6] sm:$0x3f]
    %v1061 = vld [vmem:[%s0 + $0xc] sm:$0x3f]
    %v1062 = vld [vmem:[%s0 + $0x12] sm:$0x3f]
    %v1063 = vld [vmem:[%s0 + $0x18] sm:$0x3f]
    %v1064 = vld [vmem:[%s0 + $0x1e] sm:$0x3f]
    %v1065 = vld [vmem:[%s0 + $0x24] sm:$0x3f]
    %v1066 = vld [vmem:[%s0 + $0x2a] sm:$0x3f]
    %v1075 = vcombine.high %v1059, %v1059
    %v1077 = vunpack.c.l.s4 1983009808
    %v1078 = vunpack.c.0.s8 %v1077
    %v1079 = vlaneseq
    %v1080 = vshrl.u32 %v1079, 7
    %v1081 = vsub.s32 %v1078, %v1080
    %v1082 = vrot.slane %v1059, %v1081
    %v1084 = vunpack.c.l.s4 1983009808
    %v1085 = vunpack.c.0.s8 %v1084
    %v1086 = vlaneseq
    %v1087 = vshrl.u32 %v1086, 7
    %v1088 = vsub.s32 %v1085, %v1087
    %v1089 = vrot.slane %v1075, %v1088
    %v1090 = vcombine.high %v1082, %v1082
    %v1091 = vcombine.high %v1060, %v1060
    %v1093 = vunpack.c.l.s4 1983009808
    %v1094 = vunpack.c.0.s8 %v1093
    %v1095 = vlaneseq
    %v1096 = vshrl.u32 %v1095, 7
    %v1097 = vsub.s32 %v1094, %v1096
    %v1098 = vrot.slane %v1060, %v1097
    %v1100 = vunpack.c.l.s4 1983009808
    %v1101 = vunpack.c.0.s8 %v1100
    %v1102 = vlaneseq
    %v1103 = vshrl.u32 %v1102, 7
    %v1104 = vsub.s32 %v1101, %v1103
    %v1105 = vrot.slane %v1091, %v1104
    %v1106 = vcombine.high %v1098, %v1098
    %v1107 = vcombine.high %v1061, %v1061
    %v1109 = vunpack.c.l.s4 1983009808
    %v1110 = vunpack.c.0.s8 %v1109
    %v1111 = vlaneseq
    %v1112 = vshrl.u32 %v1111, 7
    %v1113 = vsub.s32 %v1110, %v1112
    %v1114 = vrot.slane %v1061, %v1113
    %v1116 = vunpack.c.l.s4 1983009808
    %v1117 = vunpack.c.0.s8 %v1116
    %v1118 = vlaneseq
    %v1119 = vshrl.u32 %v1118, 7
    %v1120 = vsub.s32 %v1117, %v1119
    %v1121 = vrot.slane %v1107, %v1120
    %v1122 = vcombine.high %v1114, %v1114
    %v1123 = vcombine.high %v1062, %v1062
    %v1125 = vunpack.c.l.s4 1983009808
    %v1126 = vunpack.c.0.s8 %v1125
    %v1127 = vlaneseq
    %v1128 = vshrl.u32 %v1127, 7
    %v1129 = vsub.s32 %v1126, %v1128
    %v1130 = vrot.slane %v1062, %v1129
    %v1132 = vunpack.c.l.s4 1983009808
    %v1133 = vunpack.c.0.s8 %v1132
    %v1134 = vlaneseq
    %v1135 = vshrl.u32 %v1134, 7
    %v1136 = vsub.s32 %v1133, %v1135
    %v1137 = vrot.slane %v1123, %v1136
    %v1138 = vcombine.high %v1130, %v1130
    %v1139 = vcombine.high %v1063, %v1063
    %v1141 = vunpack.c.l.s4 1983009808
    %v1142 = vunpack.c.0.s8 %v1141
    %v1143 = vlaneseq
    %v1144 = vshrl.u32 %v1143, 7
    %v1145 = vsub.s32 %v1142, %v1144
    %v1146 = vrot.slane %v1063, %v1145
    %v1148 = vunpack.c.l.s4 1983009808
    %v1149 = vunpack.c.0.s8 %v1148
    %v1150 = vlaneseq
    %v1151 = vshrl.u32 %v1150, 7
    %v1152 = vsub.s32 %v1149, %v1151
    %v1153 = vrot.slane %v1139, %v1152
    %v1154 = vcombine.high %v1146, %v1146
    %v1155 = vcombine.high %v1064, %v1064
    %v1157 = vunpack.c.l.s4 1983009808
    %v1158 = vunpack.c.0.s8 %v1157
    %v1159 = vlaneseq
    %v1160 = vshrl.u32 %v1159, 7
    %v1161 = vsub.s32 %v1158, %v1160
    %v1162 = vrot.slane %v1064, %v1161
    %v1164 = vunpack.c.l.s4 1983009808
    %v1165 = vunpack.c.0.s8 %v1164
    %v1166 = vlaneseq
    %v1167 = vshrl.u32 %v1166, 7
    %v1168 = vsub.s32 %v1165, %v1167
    %v1169 = vrot.slane %v1155, %v1168
    %v1170 = vcombine.high %v1162, %v1162
    %v1171 = vcombine.high %v1065, %v1065
    %v1173 = vunpack.c.l.s4 1983009808
    %v1174 = vunpack.c.0.s8 %v1173
    %v1175 = vlaneseq
    %v1176 = vshrl.u32 %v1175, 7
    %v1177 = vsub.s32 %v1174, %v1176
    %v1178 = vrot.slane %v1065, %v1177
    %v1180 = vunpack.c.l.s4 1983009808
    %v1181 = vunpack.c.0.s8 %v1180
    %v1182 = vlaneseq
    %v1183 = vshrl.u32 %v1182, 7
    %v1184 = vsub.s32 %v1181, %v1183
    %v1185 = vrot.slane %v1171, %v1184
    %v1186 = vcombine.high %v1178, %v1178
    %v1187 = vcombine.high %v1066, %v1066
    %v1189 = vunpack.c.l.s4 1983009808
    %v1190 = vunpack.c.0.s8 %v1189
    %v1191 = vlaneseq
    %v1192 = vshrl.u32 %v1191, 7
    %v1193 = vsub.s32 %v1190, %v1192
    %v1194 = vrot.slane %v1066, %v1193
    %v1196 = vunpack.c.l.s4 1983009808
    %v1197 = vunpack.c.0.s8 %v1196
    %v1198 = vlaneseq
    %v1199 = vshrl.u32 %v1198, 7
    %v1200 = vsub.s32 %v1197, %v1199
    %v1201 = vrot.slane %v1187, %v1200
    %v1202 = vcombine.high %v1194, %v1194
    %vm1227 = vcmask 1041408
    %v1228 = vsel %vm1227, %v1082, 0.0
    %v1229 = vsel %vm1227, %v1098, 0.0
    %v1230 = vadd.f32 %v1228, %v1229
    %v1231 = vsel %vm1227, %v1114, 0.0
    %v1232 = vadd.f32 %v1230, %v1231
    %v1233 = vsel %vm1227, %v1130, 0.0
    %v1234 = vadd.f32 %v1232, %v1233
    %v1235 = vsel %vm1227, %v1146, 0.0
    %v1236 = vadd.f32 %v1234, %v1235
    %v1237 = vsel %vm1227, %v1162, 0.0
    %v1238 = vadd.f32 %v1236, %v1237
    %v1239 = vsel %vm1227, %v1178, 0.0
    %v1240 = vadd.f32 %v1238, %v1239
    %v1241 = vsel %vm1227, %v1194, 0.0
    %v1242 = vadd.f32 %v1240, %v1241
    %v1243 = vsel %vm1227, %v1090, 0.0
    %v1244 = vsel %vm1227, %v1106, 0.0
    %v1245 = vadd.f32 %v1243, %v1244
    %v1246 = vsel %vm1227, %v1122, 0.0
    %v1247 = vadd.f32 %v1245, %v1246
    %v1248 = vsel %vm1227, %v1138, 0.0
    %v1249 = vadd.f32 %v1247, %v1248
    %v1250 = vsel %vm1227, %v1154, 0.0
    %v1251 = vadd.f32 %v1249, %v1250
    %v1252 = vsel %vm1227, %v1170, 0.0
    %v1253 = vadd.f32 %v1251, %v1252
    %v1254 = vsel %vm1227, %v1186, 0.0
    %v1255 = vadd.f32 %v1253, %v1254
    %v1256 = vsel %vm1227, %v1202, 0.0
    %v1257 = vadd.f32 %v1255, %v1256
    %v1258 = vsel %vm1227, %v1089, 0.0
    %v1259 = vsel %vm1227, %v1105, 0.0
    %v1260 = vadd.f32 %v1258, %v1259
    %v1261 = vsel %vm1227, %v1121, 0.0
    %v1262 = vadd.f32 %v1260, %v1261
    %v1263 = vsel %vm1227, %v1137, 0.0
    %v1264 = vadd.f32 %v1262, %v1263
    %v1265 = vsel %vm1227, %v1153, 0.0
    %v1266 = vadd.f32 %v1264, %v1265
    %v1267 = vsel %vm1227, %v1169, 0.0
    %v1268 = vadd.f32 %v1266, %v1267
    %v1269 = vsel %vm1227, %v1185, 0.0
    %v1270 = vadd.f32 %v1268, %v1269
    %v1271 = vsel %vm1227, %v1201, 0.0
    %v1272 = vadd.f32 %v1270, %v1271
    %v1273 = vrcp.pop 8.0
    %v1274 = vmul.f32 %v1242, %v1273
    %v1275 = vmul.f32 %v1257, %v1273
    %v1276 = vmul.f32 %v1272, %v1273
    %v1277 = vld [vmem:[%s5] sm:$0xff]
    %v1278 = vld [vmem:[%s5 + $0x8] sm:$0xff]
    %v1279 = vld [vmem:[%s5 + $0x10] sm:$0xff]
    %v1280 = vld [vmem:[%s5 + $0x18] sm:$0xff]
    %v1281 = vld [vmem:[%s5 + $0x20] sm:$0xff]
    %v1282 = vld [vmem:[%s5 + $0x28] sm:$0xff]
    %v1283 = vld [vmem:[%s5 + $0x30] sm:$0xff]
    %v1284 = vld [vmem:[%s5 + $0x38] sm:$0xff]
    %v1285 = vld [vmem:[%s5 + $0x40] sm:$0xff]
    %v1286 = vld [vmem:[%s5 + $0x48] sm:$0xff]
    %v1287 = vld [vmem:[%s5 + $0x50] sm:$0xff]
    %v1288 = vld [vmem:[%s5 + $0x58] sm:$0xff]
    %v1289 = vld [vmem:[%s5 + $0x60] sm:$0xff]
    %v1290 = vld [vmem:[%s5 + $0x68] sm:$0xff]
    %v1291 = vld [vmem:[%s5 + $0x70] sm:$0xff]
    %v1292 = vld [vmem:[%s5 + $0x78] sm:$0xff]
    %v1293 = vld [vmem:[%s5 + $0x80] sm:$0xff]
    %v1294 = vld [vmem:[%s5 + $0x88] sm:$0xff]
    %v1295 = vld [vmem:[%s5 + $0x90] sm:$0xff]
    %v1296 = vld [vmem:[%s5 + $0x98] sm:$0xff]
    %v1297 = vld [vmem:[%s5 + $0xa0] sm:$0xff]
    %v1298 = vld [vmem:[%s5 + $0xa8] sm:$0xff]
    %v1299 = vld [vmem:[%s5 + $0xb0] sm:$0xff]
    %v1300 = vld [vmem:[%s5 + $0xb8] sm:$0xff]
    %v1301 = vld [vmem:[%s5 + $0xc0] sm:$0xff]
    %v1302 = vld [vmem:[%s5 + $0xc8] sm:$0xff]
    %v1303 = vld [vmem:[%s5 + $0xd0] sm:$0xff]
    %v1304 = vld [vmem:[%s5 + $0xd8] sm:$0xff]
    %v1305 = vld [vmem:[%s5 + $0xe0] sm:$0xff]
    %v1306 = vld [vmem:[%s5 + $0xe8] sm:$0xff]
    %v1307 = vld [vmem:[%s5 + $0xf0] sm:$0xff]
    %v1308 = vld [vmem:[%s5 + $0xf8] sm:$0xff]
    %v1309 = vld [vmem:[%s5 + $0x100] sm:$0xff]
    %v1310 = vld [vmem:[%s5 + $0x108] sm:$0xff]
    %v1311 = vld [vmem:[%s5 + $0x110] sm:$0xff]
    %v1312 = vld [vmem:[%s5 + $0x118] sm:$0xff]
    %v1313 = vld [vmem:[%s5 + $0x120] sm:$0xff]
    %v1314 = vld [vmem:[%s5 + $0x128] sm:$0xff]
    %v1315 = vld [vmem:[%s5 + $0x130] sm:$0xff]
    %v1316 = vld [vmem:[%s5 + $0x138] sm:$0xff]
    %v1317 = vld [vmem:[%s5 + $0x140] sm:$0xff]
    %v1318 = vld [vmem:[%s5 + $0x148] sm:$0xff]
    %v1319 = vld [vmem:[%s5 + $0x150] sm:$0xff]
    %v1320 = vld [vmem:[%s5 + $0x158] sm:$0xff]
    %v1321 = vld [vmem:[%s5 + $0x160] sm:$0xff]
    %v1322 = vld [vmem:[%s5 + $0x168] sm:$0xff]
    %v1323 = vld [vmem:[%s5 + $0x170] sm:$0xff]
    %v1324 = vld [vmem:[%s5 + $0x178] sm:$0xff]
    %v1325 = vld [vmem:[%s6] sm:$0x1]
    %v1327 = vlaneseq
    %v1328 = vshrl.u32 %v1327, 7
    %v1329 = vsub.s32 0, %v1328
    %v1330 = vrot.slane %v1325, %v1329
    %1332 = vmatprep.subr.mxu0 0.0
    %1333 = vmatpush1.msra.mxu0 %v1277
    %1334 = vmatprep.subr.mxu0 0.0
    %1335 = vmatpush1.msra.mxu0 %v1278
    %1336 = vmatprep.subr.mxu0 0.0
    %1337 = vmatpush1.msra.mxu0 %v1279
    %1338 = vmatprep.subr.mxu0 0.0
    %1339 = vmatpush1.msra.mxu0 %v1280
    %1340 = vmatprep.subr.mxu0 0.0
    %1341 = vmatpush1.msra.mxu0 %v1281
    %1342 = vmatprep.subr.mxu0 0.0
    %1343 = vmatpush1.msra.mxu0 %v1282
    %1344 = vmatprep.subr.mxu0 0.0
    %1345 = vmatpush1.msra.mxu0 %v1283
    %1346 = vmatprep.subr.mxu0 0.0
    %1347 = vmatpush1.msra.mxu0 %v1284
    %1348 = vmatprep.subr.mxu0 0.0
    %1349 = vmatpush1.msra.mxu0 %v1285
    %1350 = vmatprep.subr.mxu0 0.0
    %1351 = vmatpush1.msra.mxu0 %v1286
    %1352 = vmatprep.subr.mxu0 0.0
    %1353 = vmatpush1.msra.mxu0 %v1287
    %1354 = vmatprep.subr.mxu0 0.0
    %1355 = vmatpush1.msra.mxu0 %v1288
    %1356 = vmatprep.subr.mxu0 0.0
    %1357 = vmatpush1.msra.mxu0 %v1289
    %1358 = vmatprep.subr.mxu0 0.0
    %1359 = vmatpush1.msra.mxu0 %v1290
    %1360 = vmatprep.subr.mxu0 0.0
    %1361 = vmatpush1.msra.mxu0 %v1291
    %1362 = vmatprep.subr.mxu0 0.0
    %1363 = vmatpush1.msra.mxu0 %v1292
    %1364 = vmatprep.subr.mxu0 0.0
    %1365 = vmatpush1.msra.mxu0 %v1293
    %1366 = vmatprep.subr.mxu0 0.0
    %1367 = vmatpush1.msra.mxu0 %v1294
    %1368 = vmatprep.subr.mxu0 0.0
    %1369 = vmatpush1.msra.mxu0 %v1295
    %1370 = vmatprep.subr.mxu0 0.0
    %1371 = vmatpush1.msra.mxu0 %v1296
    %1372 = vmatprep.subr.mxu0 0.0
    %1373 = vmatpush1.msra.mxu0 %v1297
    %1374 = vmatprep.subr.mxu0 0.0
    %1375 = vmatpush1.msra.mxu0 %v1298
    %1376 = vmatprep.subr.mxu0 0.0
    %1377 = vmatpush1.msra.mxu0 %v1299
    %1378 = vmatprep.subr.mxu0 0.0
    %1379 = vmatpush1.msra.mxu0 %v1300
    %1380 = vmatprep.subr.mxu0 0.0
    %1381 = vmatpush1.msra.mxu0 %v1301
    %1382 = vmatprep.subr.mxu0 0.0
    %1383 = vmatpush1.msra.mxu0 %v1302
    %1384 = vmatprep.subr.mxu0 0.0
    %1385 = vmatpush1.msra.mxu0 %v1303
    %1386 = vmatprep.subr.mxu0 0.0
    %1387 = vmatpush1.msra.mxu0 %v1304
    %1388 = vmatprep.subr.mxu0 0.0
    %1389 = vmatpush1.msra.mxu0 %v1305
    %1390 = vmatprep.subr.mxu0 0.0
    %1391 = vmatpush1.msra.mxu0 %v1306
    %1392 = vmatprep.subr.mxu0 0.0
    %1393 = vmatpush1.msra.mxu0 %v1307
    %1394 = vmatprep.subr.mxu0 0.0
    %1395 = vmatpush1.msra.mxu0 %v1308
    %1396 = vmatprep.mubr.f32.mxu0 %v1275
    %1397 = vmatmul.mubr.f32.gmra.mrb[0].mxu0 %v1274
    %v1398 = vpop.f32.mrb[0].mxu0
    %v1399 = vadd.f32 %v1330, %v1398
    %v1400 = vpop.f32.mrb[0].mxu0
    %1401 = vdwg.mxu0
    %1402 = vmatprep.subr.mxu0 0.0
    %1403 = vmatpush1.msra.mxu0 %v1309
    %1404 = vmatprep.subr.mxu0 0.0
    %1405 = vmatpush1.msra.mxu0 %v1310
    %1406 = vmatprep.subr.mxu0 0.0
    %1407 = vmatpush1.msra.mxu0 %v1311
    %1408 = vmatprep.subr.mxu0 0.0
    %1409 = vmatpush1.msra.mxu0 %v1312
    %1410 = vmatprep.subr.mxu0 0.0
    %1411 = vmatpush1.msra.mxu0 %v1313
    %1412 = vmatprep.subr.mxu0 0.0
    %1413 = vmatpush1.msra.mxu0 %v1314
    %1414 = vmatprep.subr.mxu0 0.0
    %1415 = vmatpush1.msra.mxu0 %v1315
    %1416 = vmatprep.subr.mxu0 0.0
    %1417 = vmatpush1.msra.mxu0 %v1316
    %1418 = vmatprep.subr.mxu0 0.0
    %1419 = vmatpush1.msra.mxu0 %v1317
    %1420 = vmatprep.subr.mxu0 0.0
    %1421 = vmatpush1.msra.mxu0 %v1318
    %1422 = vmatprep.subr.mxu0 0.0
    %1423 = vmatpush1.msra.mxu0 %v1319
    %1424 = vmatprep.subr.mxu0 0.0
    %1425 = vmatpush1.msra.mxu0 %v1320
    %1426 = vmatprep.subr.mxu0 0.0
    %1427 = vmatpush1.msra.mxu0 %v1321
    %1428 = vmatprep.subr.mxu0 0.0
    %1429 = vmatpush1.msra.mxu0 %v1322
    %1430 = vmatprep.subr.mxu0 0.0
    %1431 = vmatpush1.msra.mxu0 %v1323
    %1432 = vmatprep.subr.mxu0 0.0
    %1433 = vmatpush1.msra.mxu0 %v1324
    %1434 = vmatprep.subr.mxu0 0.0
    %1435 = vmatpush1.msra.mxu0 0.0
    %1436 = vmatprep.subr.mxu0 0.0
    %1437 = vmatpush1.msra.mxu0 0.0
    %1438 = vmatprep.subr.mxu0 0.0
    %1439 = vmatpush1.msra.mxu0 0.0
    %1440 = vmatprep.subr.mxu0 0.0
    %1441 = vmatpush1.msra.mxu0 0.0
    %1442 = vmatprep.subr.mxu0 0.0
    %1443 = vmatpush1.msra.mxu0 0.0
    %1444 = vmatprep.subr.mxu0 0.0
    %1445 = vmatpush1.msra.mxu0 0.0
    %1446 = vmatprep.subr.mxu0 0.0
    %1447 = vmatpush1.msra.mxu0 0.0
    %1448 = vmatprep.subr.mxu0 0.0
    %1449 = vmatpush1.msra.mxu0 0.0
    %1450 = vmatprep.subr.mxu0 0.0
    %1451 = vmatpush1.msra.mxu0 0.0
    %1452 = vmatprep.subr.mxu0 0.0
    %1453 = vmatpush1.msra.mxu0 0.0
    %1454 = vmatprep.subr.mxu0 0.0
    %1455 = vmatpush1.msra.mxu0 0.0
    %1456 = vmatprep.subr.mxu0 0.0
    %1457 = vmatpush1.msra.mxu0 0.0
    %1458 = vmatprep.subr.mxu0 0.0
    %1459 = vmatpush1.msra.mxu0 0.0
    %1460 = vmatprep.subr.mxu0 0.0
    %1461 = vmatpush1.msra.mxu0 0.0
    %1462 = vmatprep.subr.mxu0 0.0
    %1463 = vmatpush1.msra.mxu0 0.0
    %1464 = vmatprep.subr.mxu0 0.0
    %1465 = vmatpush1.msra.mxu0 0.0
    %1466 = vmatprep.mubr.f32.mxu0 0.0
    %1467 = vmatmul.mubr.f32.gmra.mrb[0].mxu0 %v1276
    %v1468 = vpop.f32.mrb[0].mxu0
    %v1469 = vadd.f32 %v1399, %v1468
    %v1470 = vpop.f32.mrb[0].mxu0
    %1471 = vdwg.mxu0
    %vm1472 = vcmask 25600
    %v1473 = vsel %vm1472, %v1469, -inf
    %1474 = vmax.xlane.f32.xlu0 %v1473
    %v1475 = vpop.xlane.xlu0 %1474
    %v1476 = vrot.slane %v1475, 4
    %v1477 = vmax.f32 %v1475, %v1476
    %v1478 = vrot.slane %v1477, 2
    %v1479 = vmax.f32 %v1477, %v1478
    %v1480 = vrot.slane %v1479, 1
    %v1481 = vmax.f32 %v1479, %v1480
    %s1482 = vtos %v1481
    %v1483 = vstv %s1482
    %v1484 = vsub.f32 %v1469, %v1483
    %v1485 = vmul.f32 %v1484, 1.442695
    %v1486 = vpow.pop %v1485
    %v1487 = vsel %vm1472, %v1486, 0.0
    %1488 = vadd.xlane.f32.xlu0 %v1487
    %v1489 = vpop.xlane.xlu0 %1488
    %v1490 = vrot.slane %v1489, 4
    %v1491 = vadd.f32 %v1489, %v1490
    %v1492 = vrot.slane %v1491, 2
    %v1493 = vadd.f32 %v1491, %v1492
    %v1494 = vrot.slane %v1493, 1
    %v1495 = vadd.f32 %v1493, %v1494
    %s1496 = vtos %v1495
    %v1497 = vstv %s1496
    %v1498 = vlog2.pop %v1497
    %v1499 = vmul.f32 %v1498, 0.6931472
    %s1500 = vtos %v1499
    %s1501 = sadd.f32 %s1482, %s1500
    %v1502 = vstv %s1501
    %v1503 = vsub.f32 %v1469, %v1502
    %v1504 = vsel %vm1472, %v1056, -inf
    %1505 = vmax.xlane.f32.xlu0 %v1504
    %v1506 = vpop.xlane.xlu0 %1505
    %v1507 = vrot.slane %v1506, 4
    %v1508 = vmax.f32 %v1506, %v1507
    %v1509 = vrot.slane %v1508, 2
    %v1510 = vmax.f32 %v1508, %v1509
    %v1511 = vrot.slane %v1510, 1
    %v1512 = vmax.f32 %v1510, %v1511
    %s1513 = vtos %v1512
    %v1514 = vstv %s1513
    %v1515 = vsub.f32 %v1056, %v1514
    %v1516 = vmul.f32 %v1515, 1.442695
    %v1517 = vpow.pop %v1516
    %v1518 = vsel %vm1472, %v1517, 0.0
    %1519 = vadd.xlane.f32.xlu0 %v1518
    %v1520 = vpop.xlane.xlu0 %1519
    %v1521 = vrot.slane %v1520, 4
    %v1522 = vadd.f32 %v1520, %v1521
    %v1523 = vrot.slane %v1522, 2
    %v1524 = vadd.f32 %v1522, %v1523
    %v1525 = vrot.slane %v1524, 1
    %v1526 = vadd.f32 %v1524, %v1525
    %s1527 = vtos %v1526
    %v1528 = vstv %s1527
    %v1529 = vlog2.pop %v1528
    %v1530 = vmul.f32 %v1529, 0.6931472
    %s1531 = vtos %v1530
    %s1532 = sadd.f32 %s1513, %s1531
    %v1533 = vstv %s1532
    %v1534 = vsub.f32 %v1056, %v1533
    %v1535 = vadd.f32 %v1503, %v1534
    %v1536 = vmul.f32 %v1535, 0.5
    %1537 = vst.msk [vmem:[#allocation2] sm:$0x3] %vm1472, %v1536
    // Predicated region
    $region30: #{tpu_custom_call.1} parent=1 // pred_check
      _
    $region31: #{tpu_custom_call.1} parent=1 // pred_check_branch
      %1539 = sbr.rel (0) target = $region33
    $region32: #{tpu_custom_call.1} parent=1 // pred_region
      %s1541 = ssub.s32 32, 32
      %1542 = vsyncadd [#allocation3], %s1541
      %s1544 = sshll.u32 [#allocation2], 4
      %s1545 = int_to_ptr.vmem [resolvable:$true] %s1544
      %1547 = dma.vmem_to_hbm [thread:$0]  %s1545, 32, %s7, [#allocation3]
    $region33: #{tpu_custom_call.1} parent=1 // pred_fallthru
      _
    // Predicated region
    $region34: #{tpu_custom_call.1} parent=1 // pred_check
      _
    $region35: #{tpu_custom_call.1} parent=1 // pred_check_branch
      %1549 = sbr.rel (0) target = $region37
    $region36: #{tpu_custom_call.1} parent=1 // pred_region
      %1550 = dma.done [#allocation3], 32
    $region37: #{tpu_custom_call.1} parent=1 // pred_fallthru
      _
    %1551 = vsyncpa [#allocation3], 1

</llo_original>
